<compile_context>
chip_gen: v5e
topology: v5e:2x2
jax: 0.10.0
libtpu: 0.0.40
codegen_flags: <defaults>
</compile_context>

<pallas_src>
import jax
import jax.numpy as jnp
from jax.experimental import pallas as pl
from jax.experimental.pallas import tpu as pltpu


HP = 128   # padded per-sub-model output width (real width: 5)
CP = 128   # padded classifier output width    (real width: 5)


def _round_up(x, m):
    return ((x + m - 1) // m) * m


def _ensemble_kernel(x1_ref, x2_ref, x3_ref,
                     w1_ref, w2_ref, w3_ref,
                     b_ref, wc_ref, bc_ref,
                     o_ref, acc_ref):
    """Grid = (M tiles, K tiles).  acc_ref: (tm, 3*HP) f32 accumulator."""
    k = pl.program_id(1)

    @pl.when(k == 0)
    def _():
        acc_ref[...] = jnp.zeros_like(acc_ref)

    # Three sub-model partial matmuls, accumulated into lane-aligned slices
    # of one shared accumulator (128-lane boundaries -> vreg aligned).
    acc_ref[:, 0 * HP:1 * HP] += jnp.dot(
        x1_ref[...], w1_ref[...], preferred_element_type=jnp.float32)
    acc_ref[:, 1 * HP:2 * HP] += jnp.dot(
        x2_ref[...], w2_ref[...], preferred_element_type=jnp.float32)
    acc_ref[:, 2 * HP:3 * HP] += jnp.dot(
        x3_ref[...], w3_ref[...], preferred_element_type=jnp.float32)

    @pl.when(k == pl.num_programs(1) - 1)
    def _():
        # concat is implicit (accumulator layout); relu + single classifier
        # matmul + bias, then one lane-dense store.
        h = jnp.maximum(acc_ref[...] + b_ref[...], 0.0)
        out = jnp.dot(h, wc_ref[...],
                      preferred_element_type=jnp.float32) + bc_ref[...]
        o_ref[...] = out.astype(o_ref.dtype)


def ensemble_forward(x1, x2, x3, params, *, tm_target=256, tk_target=512):
    """x1/x2/x3: NCHW float32 inputs.  params: per-model W/b + classifier."""
    n = x1.shape[0]
    # Glue: flatten NCHW -> (N, D), same as torch flattening inside model_i.
    f1 = x1.reshape(n, -1)
    f2 = x2.reshape(n, -1)
    f3 = x3.reshape(n, -1)
    d = f1.shape[1]
    feat = params["w1"].shape[1]      # per-model real output width (5)
    ncls = params["wc"].shape[1]      # classifier real output width (5)

    # Tile sizes (re-derive per problem size; conservative for all TPU gens).
    tm = min(tm_target, _round_up(n, 8))
    n_pad = _round_up(n, tm)
    tk = min(tk_target, _round_up(d, 128))
    d_pad = _round_up(d, tk)

    def pad2(a, rows, cols):
        return jnp.pad(a, ((0, rows - a.shape[0]), (0, cols - a.shape[1])))

    # Activations: zero-pad batch + feature dims (zeros don't affect dots).
    x1p = pad2(f1, n_pad, d_pad)
    x2p = pad2(f2, n_pad, d_pad)
    x3p = pad2(f3, n_pad, d_pad)

    # Sub-model weights: (D, feat) -> (d_pad, HP), zero-padded (lane dense).
    w1p = pad2(params["w1"], d_pad, HP)
    w2p = pad2(params["w2"], d_pad, HP)
    w3p = pad2(params["w3"], d_pad, HP)

    # Sub-model biases folded into one (1, 3*HP) row, block-placed.
    b_all = jnp.zeros((1, 3 * HP), jnp.float32)
    b_all = b_all.at[0, 0 * HP:0 * HP + feat].set(params["b1"].reshape(-1))
    b_all = b_all.at[0, 1 * HP:1 * HP + feat].set(params["b2"].reshape(-1))
    b_all = b_all.at[0, 2 * HP:2 * HP + feat].set(params["b3"].reshape(-1))

    # Classifier weight (3*feat, ncls) -> block-placed (3*HP, CP).
    wc = params["wc"]
    wc_pad = jnp.zeros((3 * HP, CP), jnp.float32)
    wc_pad = wc_pad.at[0 * HP:0 * HP + feat, 0:ncls].set(wc[0 * feat:1 * feat])
    wc_pad = wc_pad.at[1 * HP:1 * HP + feat, 0:ncls].set(wc[1 * feat:2 * feat])
    wc_pad = wc_pad.at[2 * HP:2 * HP + feat, 0:ncls].set(wc[2 * feat:3 * feat])
    bc_pad = jnp.zeros((1, CP), jnp.float32)
    bc_pad = bc_pad.at[0, 0:ncls].set(params["bc"].reshape(-1))

    grid = (n_pad // tm, d_pad // tk)

    out_pad = pl.pallas_call(
        _ensemble_kernel,
        out_shape=jax.ShapeDtypeStruct((n_pad, CP), jnp.float32),
        grid_spec=pltpu.PrefetchScalarGridSpec(
            num_scalar_prefetch=0,
            grid=grid,
            in_specs=[
                pl.BlockSpec((tm, tk), lambda i, k: (i, k)),       # x1
                pl.BlockSpec((tm, tk), lambda i, k: (i, k)),       # x2
                pl.BlockSpec((tm, tk), lambda i, k: (i, k)),       # x3
                pl.BlockSpec((tk, HP), lambda i, k: (k, 0)),       # w1
                pl.BlockSpec((tk, HP), lambda i, k: (k, 0)),       # w2
                pl.BlockSpec((tk, HP), lambda i, k: (k, 0)),       # w3
                pl.BlockSpec((1, 3 * HP), lambda i, k: (0, 0)),    # b_all
                pl.BlockSpec((3 * HP, CP), lambda i, k: (0, 0)),   # wc
                pl.BlockSpec((1, CP), lambda i, k: (0, 0)),        # bc
            ],
            out_specs=pl.BlockSpec((tm, CP), lambda i, k: (i, 0)),
            scratch_shapes=[pltpu.VMEM((tm, 3 * HP), jnp.float32)],
        ),
        compiler_params=pltpu.CompilerParams(
            dimension_semantics=("parallel", "arbitrary")),
    )(x1p, x2p, x3p, w1p, w2p, w3p, b_all, wc_pad, bc_pad)

    # Strip batch / class padding.
    return out_pad[:n, :ncls]


def _reference(x1, x2, x3, params):
    n = x1.shape[0]
    y1 = x1.reshape(n, -1) @ params["w1"] + params["b1"].reshape(1, -1)
    y2 = x2.reshape(n, -1) @ params["w2"] + params["b2"].reshape(1, -1)
    y3 = x3.reshape(n, -1) @ params["w3"] + params["b3"].reshape(1, -1)
    h = jnp.maximum(jnp.concatenate([y1, y2, y3], axis=1), 0.0)
    return h @ params["wc"] + params["bc"].reshape(1, -1)


if __name__ == "__main__":
    key = jax.random.PRNGKey(0)
    N, C, H, W = 2, 4, 16, 16          # small NCHW inputs
    D = C * H * W                      # flattened feature dim = 1024
    FEAT = 5                           # each sub-model outputs 5 features
    NUM_CLASSES = 5                    # classifier = Linear(3*5=15, 5)

    ks = jax.random.split(key, 11)
    x1 = jax.random.normal(ks[0], (N, C, H, W), jnp.float32)
    x2 = jax.random.normal(ks[1], (N, C, H, W), jnp.float32)
    x3 = jax.random.normal(ks[2], (N, C, H, W), jnp.float32)

    scale = 0.02
    params = {
        "w1": scale * jax.random.normal(ks[3], (D, FEAT), jnp.float32),
        "b1": scale * jax.random.normal(ks[4], (FEAT,), jnp.float32),
        "w2": scale * jax.random.normal(ks[5], (D, FEAT), jnp.float32),
        "b2": scale * jax.random.normal(ks[6], (FEAT,), jnp.float32),
        "w3": scale * jax.random.normal(ks[7], (D, FEAT), jnp.float32),
        "b3": scale * jax.random.normal(ks[8], (FEAT,), jnp.float32),
        "wc": scale * jax.random.normal(ks[9], (3 * FEAT, NUM_CLASSES),
                                        jnp.float32),
        "bc": scale * jax.random.normal(ks[10], (NUM_CLASSES,), jnp.float32),
    }

    out = ensemble_forward(x1, x2, x3, params)
    jax.block_until_ready(out)

    ref = _reference(x1, x2, x3, params)
    assert out.shape == (N, NUM_CLASSES)
    assert jnp.allclose(out, ref, atol=1e-4, rtol=1e-4), (
        "mismatch vs reference")

    print("KERNEL_OK")
</pallas_src>

<mosaic_0001>
module attributes {stable_mosaic.version = 11 : i64} {
  func.func @_ensemble_kernel(%arg0: i32, %arg1: i32, %arg2: memref<8x512xf32, #tpu.memory_space<vmem>>, %arg3: memref<8x512xf32, #tpu.memory_space<vmem>>, %arg4: memref<8x512xf32, #tpu.memory_space<vmem>>, %arg5: memref<512x128xf32, #tpu.memory_space<vmem>>, %arg6: memref<512x128xf32, #tpu.memory_space<vmem>>, %arg7: memref<512x128xf32, #tpu.memory_space<vmem>>, %arg8: memref<1x384xf32, #tpu.memory_space<vmem>>, %arg9: memref<384x128xf32, #tpu.memory_space<vmem>>, %arg10: memref<1x128xf32, #tpu.memory_space<vmem>>, %arg11: memref<8x128xf32, #tpu.memory_space<vmem>>, %arg12: memref<8x384xf32, #tpu.memory_space<vmem>>) attributes {dimension_semantics = [#tpu.dimension_semantics<parallel>, #tpu.dimension_semantics<arbitrary>], iteration_bounds = array<i64: 1, 2>, scalar_prefetch = 0 : i64, scratch_operands = 1 : i64, tpu.core_type = #tpu.core_type<tc>, window_params = [{transform_indices = @transform_0, window_bounds = array<i64: 8, 512>}, {transform_indices = @transform_1, window_bounds = array<i64: 8, 512>}, {transform_indices = @transform_2, window_bounds = array<i64: 8, 512>}, {transform_indices = @transform_3, window_bounds = array<i64: 512, 128>}, {transform_indices = @transform_4, window_bounds = array<i64: 512, 128>}, {transform_indices = @transform_5, window_bounds = array<i64: 512, 128>}, {pipeline_mode = #tpu.pipeline_mode<synchronous>, transform_indices = @transform_6, window_bounds = array<i64: 1, 384>}, {pipeline_mode = #tpu.pipeline_mode<synchronous>, transform_indices = @transform_7, window_bounds = array<i64: 384, 128>}, {pipeline_mode = #tpu.pipeline_mode<synchronous>, transform_indices = @transform_8, window_bounds = array<i64: 1, 128>}, {transform_indices = @transform_9, window_bounds = array<i64: 8, 128>}]} {
    %c0_i32 = arith.constant 0 : i32
    %0 = arith.cmpi eq, %arg1, %c0_i32 : i32
    %1 = arith.extui %0 : i1 to i32
    %c0_i32_0 = arith.constant 0 : i32
    %2 = arith.cmpi ne, %1, %c0_i32_0 : i32
    scf.if %2 {
      %cst_25 = arith.constant 0.000000e+00 : f32
      %24 = vector.broadcast %cst_25 : f32 to vector<8x384xf32>
      %c0_26 = arith.constant 0 : index
      %c0_27 = arith.constant 0 : index
      %25 = vector.load %arg12[%c0_26, %c0_27] : memref<8x384xf32, #tpu.memory_space<vmem>>, vector<8x384xf32>
      tpu.vector_store %arg12[%c0_26, %c0_27], %24 {strides = array<i32>} : memref<8x384xf32, #tpu.memory_space<vmem>>, vector<8x384xf32>,
    } else {
    }
    %c0 = arith.constant 0 : index
    %c0_1 = arith.constant 0 : index
    %3 = vector.load %arg12[%c0, %c0_1] : memref<8x384xf32, #tpu.memory_space<vmem>>, vector<8x128xf32>
    %c0_2 = arith.constant 0 : index
    %c0_3 = arith.constant 0 : index
    %4 = vector.load %arg2[%c0_2, %c0_3] : memref<8x512xf32, #tpu.memory_space<vmem>>, vector<8x512xf32>
    %c0_4 = arith.constant 0 : index
    %c0_5 = arith.constant 0 : index
    %5 = vector.load %arg5[%c0_4, %c0_5] : memref<512x128xf32, #tpu.memory_space<vmem>>, vector<512x128xf32>
    %cst = arith.constant dense<0.000000e+00> : vector<8x128xf32>
    %6 = tpu.matmul %4, %5, %cst {dimension_numbers = #tpu.dot_dimension_numbers<[1], [0], [0], [1], [0, 0, 1, 1], [], []>} : vector<8x512xf32>, vector<512x128xf32>, vector<8x128xf32> -> vector<8x128xf32>
    %7 = arith.addf %3, %6 : vector<8x128xf32>
    %c0_6 = arith.constant 0 : index
    %c0_7 = arith.constant 0 : index
    %8 = vector.load %arg12[%c0_6, %c0_7] : memref<8x384xf32, #tpu.memory_space<vmem>>, vector<8x128xf32>
    tpu.vector_store %arg12[%c0_6, %c0_7], %7 {strides = array<i32>} : memref<8x384xf32, #tpu.memory_space<vmem>>, vector<8x128xf32>,
    %c0_8 = arith.constant 0 : index
    %c128 = arith.constant 128 : index
    %9 = vector.load %arg12[%c0_8, %c128] : memref<8x384xf32, #tpu.memory_space<vmem>>, vector<8x128xf32>
    %c0_9 = arith.constant 0 : index
    %c0_10 = arith.constant 0 : index
    %10 = vector.load %arg3[%c0_9, %c0_10] : memref<8x512xf32, #tpu.memory_space<vmem>>, vector<8x512xf32>
    %c0_11 = arith.constant 0 : index
    %c0_12 = arith.constant 0 : index
    %11 = vector.load %arg6[%c0_11, %c0_12] : memref<512x128xf32, #tpu.memory_space<vmem>>, vector<512x128xf32>
    %cst_13 = arith.constant dense<0.000000e+00> : vector<8x128xf32>
    %12 = tpu.matmul %10, %11, %cst_13 {dimension_numbers = #tpu.dot_dimension_numbers<[1], [0], [0], [1], [0, 0, 1, 1], [], []>} : vector<8x512xf32>, vector<512x128xf32>, vector<8x128xf32> -> vector<8x128xf32>
    %13 = arith.addf %9, %12 : vector<8x128xf32>
    %c0_14 = arith.constant 0 : index
    %c128_15 = arith.constant 128 : index
    %14 = vector.load %arg12[%c0_14, %c128_15] : memref<8x384xf32, #tpu.memory_space<vmem>>, vector<8x128xf32>
    tpu.vector_store %arg12[%c0_14, %c128_15], %13 {strides = array<i32>} : memref<8x384xf32, #tpu.memory_space<vmem>>, vector<8x128xf32>,
    %c0_16 = arith.constant 0 : index
    %c256 = arith.constant 256 : index
    %15 = vector.load %arg12[%c0_16, %c256] : memref<8x384xf32, #tpu.memory_space<vmem>>, vector<8x128xf32>
    %c0_17 = arith.constant 0 : index
    %c0_18 = arith.constant 0 : index
    %16 = vector.load %arg4[%c0_17, %c0_18] : memref<8x512xf32, #tpu.memory_space<vmem>>, vector<8x512xf32>
    %c0_19 = arith.constant 0 : index
    %c0_20 = arith.constant 0 : index
    %17 = vector.load %arg7[%c0_19, %c0_20] : memref<512x128xf32, #tpu.memory_space<vmem>>, vector<512x128xf32>
    %cst_21 = arith.constant dense<0.000000e+00> : vector<8x128xf32>
    %18 = tpu.matmul %16, %17, %cst_21 {dimension_numbers = #tpu.dot_dimension_numbers<[1], [0], [0], [1], [0, 0, 1, 1], [], []>} : vector<8x512xf32>, vector<512x128xf32>, vector<8x128xf32> -> vector<8x128xf32>
    %19 = arith.addf %15, %18 : vector<8x128xf32>
    %c0_22 = arith.constant 0 : index
    %c256_23 = arith.constant 256 : index
    %20 = vector.load %arg12[%c0_22, %c256_23] : memref<8x384xf32, #tpu.memory_space<vmem>>, vector<8x128xf32>
    tpu.vector_store %arg12[%c0_22, %c256_23], %19 {strides = array<i32>} : memref<8x384xf32, #tpu.memory_space<vmem>>, vector<8x128xf32>,
    %c1_i32 = arith.constant 1 : i32
    %21 = arith.cmpi eq, %arg1, %c1_i32 : i32
    %22 = arith.extui %21 : i1 to i32
    %c0_i32_24 = arith.constant 0 : i32
    %23 = arith.cmpi ne, %22, %c0_i32_24 : i32
    scf.if %23 {
      %c0_25 = arith.constant 0 : index
      %c0_26 = arith.constant 0 : index
      %24 = vector.load %arg12[%c0_25, %c0_26] : memref<8x384xf32, #tpu.memory_space<vmem>>, vector<8x384xf32>
      %c0_27 = arith.constant 0 : index
      %c0_28 = arith.constant 0 : index
      %25 = vector.load %arg8[%c0_27, %c0_28] : memref<1x384xf32, #tpu.memory_space<vmem>>, vector<1x384xf32>
      %26 = vector.broadcast %25 : vector<1x384xf32> to vector<8x384xf32>
      %27 = arith.addf %24, %26 : vector<8x384xf32>
      %cst_29 = arith.constant 0.000000e+00 : f32
      %28 = vector.broadcast %cst_29 : f32 to vector<8x384xf32>
      %29 = arith.maximumf %27, %28 : vector<8x384xf32>
      %c0_30 = arith.constant 0 : index
      %c0_31 = arith.constant 0 : index
      %30 = vector.load %arg9[%c0_30, %c0_31] : memref<384x128xf32, #tpu.memory_space<vmem>>, vector<384x128xf32>
      %cst_32 = arith.constant dense<0.000000e+00> : vector<8x128xf32>
      %31 = tpu.matmul %29, %30, %cst_32 {dimension_numbers = #tpu.dot_dimension_numbers<[1], [0], [0], [1], [0, 0, 1, 1], [], []>} : vector<8x384xf32>, vector<384x128xf32>, vector<8x128xf32> -> vector<8x128xf32>
      %c0_33 = arith.constant 0 : index
      %c0_34 = arith.constant 0 : index
      %32 = vector.load %arg10[%c0_33, %c0_34] : memref<1x128xf32, #tpu.memory_space<vmem>>, vector<1x128xf32>
      %33 = vector.broadcast %32 : vector<1x128xf32> to vector<8x128xf32>
      %34 = arith.addf %31, %33 : vector<8x128xf32>
      %c0_35 = arith.constant 0 : index
      %c0_36 = arith.constant 0 : index
      %35 = vector.load %arg11[%c0_35, %c0_36] : memref<8x128xf32, #tpu.memory_space<vmem>>, vector<8x128xf32>
      tpu.vector_store %arg11[%c0_35, %c0_36], %34 {strides = array<i32>} : memref<8x128xf32, #tpu.memory_space<vmem>>, vector<8x128xf32>,
    } else {
    }
    return
  }
  func.func @transform_0(%arg0: i32, %arg1: i32) -> (i32, i32) {
    %c0_i32 = arith.constant 0 : i32
    return %arg0, %arg1 : i32, i32
  }
  func.func @transform_1(%arg0: i32, %arg1: i32) -> (i32, i32) {
    %c0_i32 = arith.constant 0 : i32
    return %arg0, %arg1 : i32, i32
  }
  func.func @transform_2(%arg0: i32, %arg1: i32) -> (i32, i32) {
    %c0_i32 = arith.constant 0 : i32
    return %arg0, %arg1 : i32, i32
  }
  func.func @transform_3(%arg0: i32, %arg1: i32) -> (i32, i32) {
    %c0_i32 = arith.constant 0 : i32
    %c0_i32_0 = arith.constant 0 : i32
    return %arg1, %c0_i32 : i32, i32
  }
  func.func @transform_4(%arg0: i32, %arg1: i32) -> (i32, i32) {
    %c0_i32 = arith.constant 0 : i32
    %c0_i32_0 = arith.constant 0 : i32
    return %arg1, %c0_i32 : i32, i32
  }
  func.func @transform_5(%arg0: i32, %arg1: i32) -> (i32, i32) {
    %c0_i32 = arith.constant 0 : i32
    %c0_i32_0 = arith.constant 0 : i32
    return %arg1, %c0_i32 : i32, i32
  }
  func.func @transform_6(%arg0: i32, %arg1: i32) -> (i32, i32) {
    %c0_i32 = arith.constant 0 : i32
    %c0_i32_0 = arith.constant 0 : i32
    %c0_i32_1 = arith.constant 0 : i32
    return %c0_i32, %c0_i32_0 : i32, i32
  }
  func.func @transform_7(%arg0: i32, %arg1: i32) -> (i32, i32) {
    %c0_i32 = arith.constant 0 : i32
    %c0_i32_0 = arith.constant 0 : i32
    %c0_i32_1 = arith.constant 0 : i32
    return %c0_i32, %c0_i32_0 : i32, i32
  }
  func.func @transform_8(%arg0: i32, %arg1: i32) -> (i32, i32) {
    %c0_i32 = arith.constant 0 : i32
    %c0_i32_0 = arith.constant 0 : i32
    %c0_i32_1 = arith.constant 0 : i32
    return %c0_i32, %c0_i32_0 : i32, i32
  }
  func.func @transform_9(%arg0: i32, %arg1: i32) -> (i32, i32) {
    %c0_i32 = arith.constant 0 : i32
    %c0_i32_0 = arith.constant 0 : i32
    return %arg0, %c0_i32 : i32, i32
  }
}

</mosaic_0001>

<llo_original>
// kernel: tpu_custom_call.1
$region0: #{tpu_custom_call.1}
  #allocation0 [shape = 'u32[]', space=smem, size = 0x4, offset = 0x4, fixed_abs, tag = 'smem constant byte address 0x4 - core index']
  #allocation1 [shape = 'u32[72,128]{1,0:T(1,128)}', space=vmem, size = 0x9000, scoped, tag = 'internal scratch']
  #allocation2 [shape = 'f32[8,384]{1,0:T(8,128)}', space=vmem, size = 0x3000, scoped, tag = 'scratch operand']
  %s0 = inlined_call_operand.hbm [shape: f32[8,1024], index: 0, kind: input, shape index: {}]
  %s1 = inlined_call_operand.hbm [shape: f32[8,1024], index: 1, kind: input, shape index: {}]
  %s2 = inlined_call_operand.hbm [shape: f32[8,1024], index: 2, kind: input, shape index: {}]
  %s3 = inlined_call_operand.hbm [shape: f32[1024,128], index: 3, kind: input, shape index: {}]
  %s4 = inlined_call_operand.hbm [shape: f32[1024,128], index: 4, kind: input, shape index: {}]
  %s5 = inlined_call_operand.hbm [shape: f32[1024,128], index: 5, kind: input, shape index: {}]
  %s6 = inlined_call_operand.vmem [shape: f32[1,384], index: 6, kind: input, shape index: {}]
  %s7 = inlined_call_operand.hbm [shape: f32[384,128], index: 7, kind: input, shape index: {}]
  %s8 = inlined_call_operand.vmem [shape: f32[1,128], index: 8, kind: input, shape index: {}]
  %s9 = inlined_call_operand.hbm [shape: f32[8,128], index: 9, kind: output, shape index: {}]
  %s10 = sld [smem:[#allocation0]]
  $region105: #{tpu_custom_call.1} parent=0
    _
  %s12 = ssub.s32 1, %s10
  %s13 = scalar_select 0, %s12, %s10
  $region1: #{tpu_custom_call.1} parent=0
    #allocation3 [shape = 'u8[32768]{0}', space=vmem, size = 0x8000, scoped, tag = 'input window, operand 0']
    #allocation4 [shape = 's32[2]{0}', space=sflag, size = 0x8, scoped, tag = 'scoped memory for tpu_custom_call.1']
    #allocation5 [shape = 's32[2]{0}', space=sflag, size = 0x8, scoped, tag = 'scoped memory for tpu_custom_call.1']
    #allocation6 [shape = 'u8[32768]{0}', space=vmem, size = 0x8000, scoped, tag = 'input window, operand 1']
    #allocation7 [shape = 's32[2]{0}', space=sflag, size = 0x8, scoped, tag = 'scoped memory for tpu_custom_call.1']
    #allocation8 [shape = 'u8[32768]{0}', space=vmem, size = 0x8000, scoped, tag = 'input window, operand 2']
    #allocation9 [shape = 'u8[524288]{0}', space=vmem, size = 0x80000, scoped, tag = 'input window, operand 3']
    #allocation10 [shape = 's32[2]{0}', space=sflag, size = 0x8, scoped, tag = 'scoped memory for tpu_custom_call.1']
    #allocation11 [shape = 'u8[524288]{0}', space=vmem, size = 0x80000, scoped, tag = 'input window, operand 4']
    #allocation12 [shape = 'u8[524288]{0}', space=vmem, size = 0x80000, scoped, tag = 'input window, operand 5']
    #allocation13 [shape = 's32[2]{0}', space=sflag, size = 0x8, scoped, tag = 'scoped memory for tpu_custom_call.1']
    #allocation14 [shape = 'u8[196608]{0}', space=vmem, size = 0x30000, scoped, tag = 'input window, operand 7, single buffered']
    #allocation15 [shape = 'u8[4096]{0}', space=vmem, size = 0x1000, scoped, tag = 'output window, operand 0, single buffered']
    %14 = vsyncpa [#allocation4], 0
    %s15 = scalar_lea.sflag [#allocation4], 1
    %16 = vsyncpa %s15, 0
    %17 = vsyncpa [#allocation7], 0
    %s18 = scalar_lea.sflag [#allocation7], 1
    %19 = vsyncpa %s18, 0
    %20 = vsyncpa [#allocation10], 0
    %s21 = scalar_lea.sflag [#allocation10], 1
    %22 = vsyncpa %s21, 0
    %23 = vsyncpa [#allocation13], 0
    %s24 = scalar_lea.sflag [#allocation13], 1
    %25 = vsyncpa %s24, 0
    %26 = vsyncpa [#allocation5], 0
    loop: start=0, step=1, limit=4
    $region2: #{tpu_custom_call.1} parent=1 // loop_pre_header
      _
    $region3: #{tpu_custom_call.1} parent=1 // loop_header
      %s28 = sphi 0, %s32
      %p29 = scmp.ge.s32.totalorder %s28, 4
      %s35 = sphi 0, %s47
      %s36 = sphi 0, %s43
      %s37 = sphi 0, %s35
      %s38 = sphi 0, %s36
      %s39 = sphi 0, %s37
      %s40 = sphi 0, %s38
      %s52 = sphi 0, %s54
      %s55 = sphi 0, %s52
      %s56 = sphi 0, %s55
      %s72 = sphi 0, %s56
      %s80 = sphi 0, %s82
      %s83 = sphi 0, %s80
      %s84 = sphi 0, %s83
      %s100 = sphi 0, %s84
      %s108 = sphi 0, %s110
      %s111 = sphi 0, %s108
      %s112 = sphi 0, %s111
      %s128 = sphi 0, %s112
      %s134 = sphi 0, %s136
      %s137 = sphi 0, %s134
      %s138 = sphi 0, %s137
      %s154 = sphi 0, %s138
      %s160 = sphi 0, %s162
      %s163 = sphi 0, %s160
      %s164 = sphi 0, %s163
      %s180 = sphi 0, %s164
      %s186 = sphi 0, %s188
      %s189 = sphi 0, %s186
      %s190 = sphi 0, %s189
      %s206 = sphi 0, %s190
      %s210 = sphi 0, %s210
      %s212 = sphi 0, %s210
      %s213 = sphi 0, %s212
      %s227 = sphi 0, %s213
      %s231 = sphi 0, %s231
      %s233 = sphi 0, %s231
      %s234 = sphi 0, %s233
      %s248 = sphi 0, %s234
      %s252 = sphi 0, %s252
      %s254 = sphi 0, %s252
      %s255 = sphi 0, %s254
      %s269 = sphi 0, %s255
      %s275 = sphi 0, %s277
      %s278 = sphi 0, %s275
      %s279 = sphi 0, %s278
      %s295 = sphi 0, %s279
    $region4: #{tpu_custom_call.1} parent=1 // loop_header_branch
      %31 = sbr.rel (%p29) target = $region8
    $region5: #{tpu_custom_call.1} parent=1 // loop_body
      %s33 = ssub.s32 %s28, 1
      %s34 = ssub.s32 %s28, 2
      %s41 = sadd.s32 1, %s36
      %p42 = scmp.ge.s32.totalorder %s41, 2
      %s43 = scalar_select %p42, 0, %s41
      %s44 = sadd.s32 1, %s35
      %s45 = scalar_select %p42, %s44, %s35
      %p46 = scmp.ge.s32.totalorder %s45, 1
      %s47 = scalar_select %p46, 0, %s45
      %s48 = ssub.s32 %s35, %s47
      %s49 = ssub.s32 %s36, %s43
      %s50 = sor.u32 %s48, %s49
      %p51 = scmp.eq.s32.totalorder %s50, 0
      %s53 = sadd.s32 %s52, 1
      %s54 = scalar_select %p51, %s52, %s53
      %p57 = pneg %p51
      %p58 = scmp.eq.s32.totalorder %s28, 1
      %p59 = por %p57, %p58
      %p60 = scmp.ne.s32.totalorder %s52, %s55
      %p61 = scmp.eq.s32.totalorder %s28, 0
      %p62 = por %p60, %p61
      %p63 = scmp.ne.s32.totalorder %s52, %s55
      %p64 = scmp.eq.s32.totalorder %s33, 1
      %p65 = por %p63, %p64
      %p66 = scmp.ne.s32.totalorder %s55, %s56
      %p67 = scmp.eq.s32.totalorder %s33, 0
      %p68 = por %p66, %p67
      %p69 = scmp.ne.s32.totalorder %s55, %s56
      %p70 = scmp.eq.s32.totalorder %s34, 1
      %p71 = por %p69, %p70
      %p73 = scmp.ne.s32.totalorder %s56, %s72
      %p74 = scmp.eq.s32.totalorder %s34, 0
      %p75 = por %p73, %p74
      %s76 = ssub.s32 %s35, %s47
      %s77 = ssub.s32 %s36, %s43
      %s78 = sor.u32 %s76, %s77
      %p79 = scmp.eq.s32.totalorder %s78, 0
      %s81 = sadd.s32 %s80, 1
      %s82 = scalar_select %p79, %s80, %s81
      %p85 = pneg %p79
      %p86 = scmp.eq.s32.totalorder %s28, 1
      %p87 = por %p85, %p86
      %p88 = scmp.ne.s32.totalorder %s80, %s83
      %p89 = scmp.eq.s32.totalorder %s28, 0
      %p90 = por %p88, %p89
      %p91 = scmp.ne.s32.totalorder %s80, %s83
      %p92 = scmp.eq.s32.totalorder %s33, 1
      %p93 = por %p91, %p92
      %p94 = scmp.ne.s32.totalorder %s83, %s84
      %p95 = scmp.eq.s32.totalorder %s33, 0
      %p96 = por %p94, %p95
      %p97 = scmp.ne.s32.totalorder %s83, %s84
      %p98 = scmp.eq.s32.totalorder %s34, 1
      %p99 = por %p97, %p98
      %p101 = scmp.ne.s32.totalorder %s84, %s100
      %p102 = scmp.eq.s32.totalorder %s34, 0
      %p103 = por %p101, %p102
      %s104 = ssub.s32 %s35, %s47
      %s105 = ssub.s32 %s36, %s43
      %s106 = sor.u32 %s104, %s105
      %p107 = scmp.eq.s32.totalorder %s106, 0
      %s109 = sadd.s32 %s108, 1
      %s110 = scalar_select %p107, %s108, %s109
      %p113 = pneg %p107
      %p114 = scmp.eq.s32.totalorder %s28, 1
      %p115 = por %p113, %p114
      %p116 = scmp.ne.s32.totalorder %s108, %s111
      %p117 = scmp.eq.s32.totalorder %s28, 0
      %p118 = por %p116, %p117
      %p119 = scmp.ne.s32.totalorder %s108, %s111
      %p120 = scmp.eq.s32.totalorder %s33, 1
      %p121 = por %p119, %p120
      %p122 = scmp.ne.s32.totalorder %s111, %s112
      %p123 = scmp.eq.s32.totalorder %s33, 0
      %p124 = por %p122, %p123
      %p125 = scmp.ne.s32.totalorder %s111, %s112
      %p126 = scmp.eq.s32.totalorder %s34, 1
      %p127 = por %p125, %p126
      %p129 = scmp.ne.s32.totalorder %s112, %s128
      %p130 = scmp.eq.s32.totalorder %s34, 0
      %p131 = por %p129, %p130
      %s132 = ssub.s32 %s36, %s43
      %p133 = scmp.eq.s32.totalorder %s132, 0
      %s135 = sadd.s32 %s134, 1
      %s136 = scalar_select %p133, %s134, %s135
      %p139 = pneg %p133
      %p140 = scmp.eq.s32.totalorder %s28, 1
      %p141 = por %p139, %p140
      %p142 = scmp.ne.s32.totalorder %s134, %s137
      %p143 = scmp.eq.s32.totalorder %s28, 0
      %p144 = por %p142, %p143
      %p145 = scmp.ne.s32.totalorder %s134, %s137
      %p146 = scmp.eq.s32.totalorder %s33, 1
      %p147 = por %p145, %p146
      %p148 = scmp.ne.s32.totalorder %s137, %s138
      %p149 = scmp.eq.s32.totalorder %s33, 0
      %p150 = por %p148, %p149
      %p151 = scmp.ne.s32.totalorder %s137, %s138
      %p152 = scmp.eq.s32.totalorder %s34, 1
      %p153 = por %p151, %p152
      %p155 = scmp.ne.s32.totalorder %s138, %s154
      %p156 = scmp.eq.s32.totalorder %s34, 0
      %p157 = por %p155, %p156
      %s158 = ssub.s32 %s36, %s43
      %p159 = scmp.eq.s32.totalorder %s158, 0
      %s161 = sadd.s32 %s160, 1
      %s162 = scalar_select %p159, %s160, %s161
      %p165 = pneg %p159
      %p166 = scmp.eq.s32.totalorder %s28, 1
      %p167 = por %p165, %p166
      %p168 = scmp.ne.s32.totalorder %s160, %s163
      %p169 = scmp.eq.s32.totalorder %s28, 0
      %p170 = por %p168, %p169
      %p171 = scmp.ne.s32.totalorder %s160, %s163
      %p172 = scmp.eq.s32.totalorder %s33, 1
      %p173 = por %p171, %p172
      %p174 = scmp.ne.s32.totalorder %s163, %s164
      %p175 = scmp.eq.s32.totalorder %s33, 0
      %p176 = por %p174, %p175
      %p177 = scmp.ne.s32.totalorder %s163, %s164
      %p178 = scmp.eq.s32.totalorder %s34, 1
      %p179 = por %p177, %p178
      %p181 = scmp.ne.s32.totalorder %s164, %s180
      %p182 = scmp.eq.s32.totalorder %s34, 0
      %p183 = por %p181, %p182
      %s184 = ssub.s32 %s36, %s43
      %p185 = scmp.eq.s32.totalorder %s184, 0
      %s187 = sadd.s32 %s186, 1
      %s188 = scalar_select %p185, %s186, %s187
      %p191 = pneg %p185
      %p192 = scmp.eq.s32.totalorder %s28, 1
      %p193 = por %p191, %p192
      %p194 = scmp.ne.s32.totalorder %s186, %s189
      %p195 = scmp.eq.s32.totalorder %s28, 0
      %p196 = por %p194, %p195
      %p197 = scmp.ne.s32.totalorder %s186, %s189
      %p198 = scmp.eq.s32.totalorder %s33, 1
      %p199 = por %p197, %p198
      %p200 = scmp.ne.s32.totalorder %s189, %s190
      %p201 = scmp.eq.s32.totalorder %s33, 0
      %p202 = por %p200, %p201
      %p203 = scmp.ne.s32.totalorder %s189, %s190
      %p204 = scmp.eq.s32.totalorder %s34, 1
      %p205 = por %p203, %p204
      %p207 = scmp.ne.s32.totalorder %s190, %s206
      %p208 = scmp.eq.s32.totalorder %s34, 0
      %p209 = por %p207, %p208
      %s211 = sadd.s32 %s210, 1
      %p214 = scmp.eq.s32.totalorder %s28, 1
      %p215 = scmp.ne.s32.totalorder %s210, %s212
      %p216 = scmp.eq.s32.totalorder %s28, 0
      %p217 = por %p215, %p216
      %p218 = scmp.ne.s32.totalorder %s210, %s212
      %p219 = scmp.eq.s32.totalorder %s33, 1
      %p220 = por %p218, %p219
      %p221 = scmp.ne.s32.totalorder %s212, %s213
      %p222 = scmp.eq.s32.totalorder %s33, 0
      %p223 = por %p221, %p222
      %p224 = scmp.ne.s32.totalorder %s212, %s213
      %p225 = scmp.eq.s32.totalorder %s34, 1
      %p226 = por %p224, %p225
      %p228 = scmp.ne.s32.totalorder %s213, %s227
      %p229 = scmp.eq.s32.totalorder %s34, 0
      %p230 = por %p228, %p229
      %s232 = sadd.s32 %s231, 1
      %p235 = scmp.eq.s32.totalorder %s28, 1
      %p236 = scmp.ne.s32.totalorder %s231, %s233
      %p237 = scmp.eq.s32.totalorder %s28, 0
      %p238 = por %p236, %p237
      %p239 = scmp.ne.s32.totalorder %s231, %s233
      %p240 = scmp.eq.s32.totalorder %s33, 1
      %p241 = por %p239, %p240
      %p242 = scmp.ne.s32.totalorder %s233, %s234
      %p243 = scmp.eq.s32.totalorder %s33, 0
      %p244 = por %p242, %p243
      %p245 = scmp.ne.s32.totalorder %s233, %s234
      %p246 = scmp.eq.s32.totalorder %s34, 1
      %p247 = por %p245, %p246
      %p249 = scmp.ne.s32.totalorder %s234, %s248
      %p250 = scmp.eq.s32.totalorder %s34, 0
      %p251 = por %p249, %p250
      %s253 = sadd.s32 %s252, 1
      %p256 = scmp.eq.s32.totalorder %s28, 1
      %p257 = scmp.ne.s32.totalorder %s252, %s254
      %p258 = scmp.eq.s32.totalorder %s28, 0
      %p259 = por %p257, %p258
      %p260 = scmp.ne.s32.totalorder %s252, %s254
      %p261 = scmp.eq.s32.totalorder %s33, 1
      %p262 = por %p260, %p261
      %p263 = scmp.ne.s32.totalorder %s254, %s255
      %p264 = scmp.eq.s32.totalorder %s33, 0
      %p265 = por %p263, %p264
      %p266 = scmp.ne.s32.totalorder %s254, %s255
      %p267 = scmp.eq.s32.totalorder %s34, 1
      %p268 = por %p266, %p267
      %p270 = scmp.ne.s32.totalorder %s255, %s269
      %p271 = scmp.eq.s32.totalorder %s34, 0
      %p272 = por %p270, %p271
      %s273 = ssub.s32 %s35, %s47
      %p274 = scmp.eq.s32.totalorder %s273, 0
      %s276 = sadd.s32 %s275, 1
      %s277 = scalar_select %p274, %s275, %s276
      %p280 = pneg %p274
      %p281 = scmp.eq.s32.totalorder %s28, 1
      %p282 = por %p280, %p281
      %p283 = scmp.ne.s32.totalorder %s275, %s278
      %p284 = scmp.eq.s32.totalorder %s28, 0
      %p285 = por %p283, %p284
      %p286 = scmp.ne.s32.totalorder %s275, %s278
      %p287 = scmp.eq.s32.totalorder %s33, 1
      %p288 = por %p286, %p287
      %p289 = scmp.ne.s32.totalorder %s278, %s279
      %p290 = scmp.eq.s32.totalorder %s33, 0
      %p291 = por %p289, %p290
      %p292 = scmp.ne.s32.totalorder %s278, %s279
      %p293 = scmp.eq.s32.totalorder %s34, 1
      %p294 = por %p292, %p293
      %p296 = scmp.ne.s32.totalorder %s279, %s295
      %p297 = scmp.eq.s32.totalorder %s34, 0
      %p298 = por %p296, %p297
      %p299 = scmp.le.s32.totalorder 1, %s28
      %p300 = scmp.lt.s32.totalorder %s28, 3
      %p301 = pnand %p299, %p300
      %p302 = pneg %p301
      // Predicated region
      $region9: #{tpu_custom_call.1} parent=5 // pred_check
        _
      $region10: #{tpu_custom_call.1} parent=5 // pred_check_branch
        %304 = sbr.rel (%p301) target = $region12
      $region11: #{tpu_custom_call.1} parent=5 // pred_region
        %s305 = ssub.s32 %s28, 1
        // Predicated region
        $region13: #{tpu_custom_call.1} parent=11 // pred_check
          %p306 = pneg %p223
        $region14: #{tpu_custom_call.1} parent=11 // pred_check_branch
          %308 = sbr.rel (%p306) target = $region16
        $region15: #{tpu_custom_call.1} parent=11 // pred_region
          _
        $region16: #{tpu_custom_call.1} parent=11 // pred_fallthru
          _
        // Predicated region
        $region17: #{tpu_custom_call.1} parent=11 // pred_check
          %p309 = pneg %p244
        $region18: #{tpu_custom_call.1} parent=11 // pred_check_branch
          %311 = sbr.rel (%p309) target = $region20
        $region19: #{tpu_custom_call.1} parent=11 // pred_region
          %313 = vsyncadd [#allocation13], 0
          %s314 = sshll.u32 %s7, 4
          %s315 = int_to_ptr.hbm [resolvable:$true] %s314
          %s316 = sshll.u32 [#allocation14], 4
          %s317 = int_to_ptr.vmem [resolvable:$true] %s316
          %322 = dma.hbm_to_vmem [thread:$0]  %s315, 6144, %s317, [#allocation13], 128, 128, 8
        $region20: #{tpu_custom_call.1} parent=11 // pred_fallthru
          _
        // Predicated region
        $region21: #{tpu_custom_call.1} parent=11 // pred_check
          %p323 = pneg %p265
        $region22: #{tpu_custom_call.1} parent=11 // pred_check_branch
          %325 = sbr.rel (%p323) target = $region24
        $region23: #{tpu_custom_call.1} parent=11 // pred_region
          _
        $region24: #{tpu_custom_call.1} parent=11 // pred_fallthru
          _
      $region12: #{tpu_custom_call.1} parent=5 // pred_fallthru
        _
      %p326 = scmp.lt.s32.totalorder %s28, 2
      // Predicated region
      $region25: #{tpu_custom_call.1} parent=5 // pred_check
        %p327 = pneg %p326
      $region26: #{tpu_custom_call.1} parent=5 // pred_check_branch
        %329 = sbr.rel (%p327) target = $region28
      $region27: #{tpu_custom_call.1} parent=5 // pred_region
        // Predicated region
        $region29: #{tpu_custom_call.1} parent=27 // pred_check
          %p330 = pneg %p62
        $region30: #{tpu_custom_call.1} parent=27 // pred_check_branch
          %332 = sbr.rel (%p330) target = $region32
        $region31: #{tpu_custom_call.1} parent=27 // pred_region
          %s333 = sand.u32 %s52, 1
          %s334 = scalar_lea.sflag [#allocation4], %s333
          %s335 = sand.u32 %s52, 1
          %s336 = smul.addr %s335, 32
          %s337 = scalar_lea.vmem [#allocation3], %s336
          %s338 = smul.u32 4, %s36
          %340 = vsyncadd %s334, 0
          %s341 = smul.addr %s35, 8
          %s342 = sadd.s32 %s338, %s341
          %s343 = smul.addr %s342, 8
          %s344 = scalar_lea.hbm %s0, %s343
          %s346 = sshll.u32 %s344, 4
          %s347 = int_to_ptr.hbm [resolvable:$true] %s346
          %s348 = sshll.u32 %s337, 4
          %s349 = int_to_ptr.vmem [resolvable:$true] %s348
          %351 = dma.hbm_to_vmem [thread:$0]  %s347, 512, %s349, %s334
        $region32: #{tpu_custom_call.1} parent=27 // pred_fallthru
          _
        // Predicated region
        $region33: #{tpu_custom_call.1} parent=27 // pred_check
          %p352 = pneg %p90
        $region34: #{tpu_custom_call.1} parent=27 // pred_check_branch
          %354 = sbr.rel (%p352) target = $region36
        $region35: #{tpu_custom_call.1} parent=27 // pred_region
          %s355 = sand.u32 %s28, 1
          %s356 = scalar_lea.sflag [#allocation7], %s355
          %s357 = sand.u32 %s80, 1
          %s358 = smul.addr %s357, 32
          %s359 = scalar_lea.vmem [#allocation6], %s358
          %s360 = smul.u32 4, %s36
          %362 = vsyncadd %s356, 0
          %s363 = smul.addr %s35, 8
          %s364 = sadd.s32 %s360, %s363
          %s365 = smul.addr %s364, 8
          %s366 = scalar_lea.hbm %s1, %s365
          %s368 = sshll.u32 %s366, 4
          %s369 = int_to_ptr.hbm [resolvable:$true] %s368
          %s370 = sshll.u32 %s359, 4
          %s371 = int_to_ptr.vmem [resolvable:$true] %s370
          %373 = dma.hbm_to_vmem [thread:$0]  %s369, 512, %s371, %s356
        $region36: #{tpu_custom_call.1} parent=27 // pred_fallthru
          _
        // Predicated region
        $region37: #{tpu_custom_call.1} parent=27 // pred_check
          %p374 = pneg %p118
        $region38: #{tpu_custom_call.1} parent=27 // pred_check_branch
          %376 = sbr.rel (%p374) target = $region40
        $region39: #{tpu_custom_call.1} parent=27 // pred_region
          %s377 = sand.u32 %s28, 1
          %s378 = scalar_lea.sflag [#allocation7], %s377
          %s379 = sand.u32 %s108, 1
          %s380 = smul.addr %s379, 32
          %s381 = scalar_lea.vmem [#allocation8], %s380
          %s382 = smul.u32 4, %s36
          %384 = vsyncadd %s378, 0
          %s385 = smul.addr %s35, 8
          %s386 = sadd.s32 %s382, %s385
          %s387 = smul.addr %s386, 8
          %s388 = scalar_lea.hbm %s2, %s387
          %s390 = sshll.u32 %s388, 4
          %s391 = int_to_ptr.hbm [resolvable:$true] %s390
          %s392 = sshll.u32 %s381, 4
          %s393 = int_to_ptr.vmem [resolvable:$true] %s392
          %395 = dma.hbm_to_vmem [thread:$0]  %s391, 512, %s393, %s378
        $region40: #{tpu_custom_call.1} parent=27 // pred_fallthru
          _
        // Predicated region
        $region41: #{tpu_custom_call.1} parent=27 // pred_check
          %p396 = pneg %p144
        $region42: #{tpu_custom_call.1} parent=27 // pred_check_branch
          %398 = sbr.rel (%p396) target = $region44
        $region43: #{tpu_custom_call.1} parent=27 // pred_region
          %s399 = sand.u32 %s28, 1
          %s400 = scalar_lea.sflag [#allocation10], %s399
          %s401 = sand.u32 %s134, 1
          %s402 = smul.addr %s401, 512
          %s403 = scalar_lea.vmem [#allocation9], %s402
          %s404 = smul.u32 64, %s36
          %406 = vsyncadd %s400, 0
          %s407 = smul.addr %s404, 8
          %s408 = scalar_lea.hbm %s3, %s407
          %s409 = sshll.u32 %s408, 4
          %s410 = int_to_ptr.hbm [resolvable:$true] %s409
          %s411 = sshll.u32 %s403, 4
          %s412 = int_to_ptr.vmem [resolvable:$true] %s411
          %417 = dma.hbm_to_vmem [thread:$0]  %s410, 8192, %s412, %s400, 128, 128, 8
        $region44: #{tpu_custom_call.1} parent=27 // pred_fallthru
          _
        // Predicated region
        $region45: #{tpu_custom_call.1} parent=27 // pred_check
          %p418 = pneg %p170
        $region46: #{tpu_custom_call.1} parent=27 // pred_check_branch
          %420 = sbr.rel (%p418) target = $region48
        $region47: #{tpu_custom_call.1} parent=27 // pred_region
          %s421 = sand.u32 %s28, 1
          %s422 = scalar_lea.sflag [#allocation10], %s421
          %s423 = sand.u32 %s160, 1
          %s424 = smul.addr %s423, 512
          %s425 = scalar_lea.vmem [#allocation11], %s424
          %s426 = smul.u32 64, %s36
          %428 = vsyncadd %s422, 0
          %s429 = smul.addr %s426, 8
          %s430 = scalar_lea.hbm %s4, %s429
          %s431 = sshll.u32 %s430, 4
          %s432 = int_to_ptr.hbm [resolvable:$true] %s431
          %s433 = sshll.u32 %s425, 4
          %s434 = int_to_ptr.vmem [resolvable:$true] %s433
          %439 = dma.hbm_to_vmem [thread:$0]  %s432, 8192, %s434, %s422, 128, 128, 8
        $region48: #{tpu_custom_call.1} parent=27 // pred_fallthru
          _
        // Predicated region
        $region49: #{tpu_custom_call.1} parent=27 // pred_check
          %p440 = pneg %p196
        $region50: #{tpu_custom_call.1} parent=27 // pred_check_branch
          %442 = sbr.rel (%p440) target = $region52
        $region51: #{tpu_custom_call.1} parent=27 // pred_region
          %s443 = sand.u32 %s28, 1
          %s444 = scalar_lea.sflag [#allocation13], %s443
          %s445 = sand.u32 %s186, 1
          %s446 = smul.addr %s445, 512
          %s447 = scalar_lea.vmem [#allocation12], %s446
          %s448 = smul.u32 64, %s36
          %450 = vsyncadd %s444, 0
          %s451 = smul.addr %s448, 8
          %s452 = scalar_lea.hbm %s5, %s451
          %s453 = sshll.u32 %s452, 4
          %s454 = int_to_ptr.hbm [resolvable:$true] %s453
          %s455 = sshll.u32 %s447, 4
          %s456 = int_to_ptr.vmem [resolvable:$true] %s455
          %461 = dma.hbm_to_vmem [thread:$0]  %s454, 8192, %s456, %s444, 128, 128, 8
        $region52: #{tpu_custom_call.1} parent=27 // pred_fallthru
          _
      $region28: #{tpu_custom_call.1} parent=5 // pred_fallthru
        _
      %p462 = scmp.le.s32.totalorder 1, %s28
      %p463 = scmp.lt.s32.totalorder %s28, 3
      %p464 = pnand %p462, %p463
      %p465 = pneg %p464
      // Predicated region
      $region53: #{tpu_custom_call.1} parent=5 // pred_check
        _
      $region54: #{tpu_custom_call.1} parent=5 // pred_check_branch
        %467 = sbr.rel (%p464) target = $region56
      $region55: #{tpu_custom_call.1} parent=5 // pred_region
        %s468 = ssub.s32 %s28, 1
        %s469 = sand.u32 %s55, 1
        %s470 = scalar_lea.sflag [#allocation4], %s469
        %s471 = sand.u32 %s55, 1
        %s472 = smul.addr %s471, 32
        %s473 = scalar_lea.vmem [#allocation3], %s472
        // Predicated region
        $region57: #{tpu_custom_call.1} parent=55 // pred_check
          %p474 = pneg %p68
        $region58: #{tpu_custom_call.1} parent=55 // pred_check_branch
          %476 = sbr.rel (%p474) target = $region60
        $region59: #{tpu_custom_call.1} parent=55 // pred_region
          %478 = dma.done %s470, 512
        $region60: #{tpu_custom_call.1} parent=55 // pred_fallthru
          _
        %s479 = sand.u32 %s33, 1
        %s480 = scalar_lea.sflag [#allocation7], %s479
        %s481 = sand.u32 %s83, 1
        %s482 = smul.addr %s481, 32
        %s483 = scalar_lea.vmem [#allocation6], %s482
        // Predicated region
        $region61: #{tpu_custom_call.1} parent=55 // pred_check
          %p484 = pneg %p96
        $region62: #{tpu_custom_call.1} parent=55 // pred_check_branch
          %486 = sbr.rel (%p484) target = $region64
        $region63: #{tpu_custom_call.1} parent=55 // pred_region
          %488 = dma.done %s480, 512
        $region64: #{tpu_custom_call.1} parent=55 // pred_fallthru
          _
        %s489 = sand.u32 %s33, 1
        %s490 = scalar_lea.sflag [#allocation7], %s489
        %s491 = sand.u32 %s111, 1
        %s492 = smul.addr %s491, 32
        %s493 = scalar_lea.vmem [#allocation8], %s492
        // Predicated region
        $region65: #{tpu_custom_call.1} parent=55 // pred_check
          %p494 = pneg %p124
        $region66: #{tpu_custom_call.1} parent=55 // pred_check_branch
          %496 = sbr.rel (%p494) target = $region68
        $region67: #{tpu_custom_call.1} parent=55 // pred_region
          %498 = dma.done %s490, 512
        $region68: #{tpu_custom_call.1} parent=55 // pred_fallthru
          _
        %s499 = sand.u32 %s33, 1
        %s500 = scalar_lea.sflag [#allocation10], %s499
        %s501 = sand.u32 %s137, 1
        %s502 = smul.addr %s501, 512
        %s503 = scalar_lea.vmem [#allocation9], %s502
        // Predicated region
        $region69: #{tpu_custom_call.1} parent=55 // pred_check
          %p504 = pneg %p150
        $region70: #{tpu_custom_call.1} parent=55 // pred_check_branch
          %506 = sbr.rel (%p504) target = $region72
        $region71: #{tpu_custom_call.1} parent=55 // pred_region
          %508 = dma.done %s500, 8192
        $region72: #{tpu_custom_call.1} parent=55 // pred_fallthru
          _
        %s509 = sand.u32 %s33, 1
        %s510 = scalar_lea.sflag [#allocation10], %s509
        %s511 = sand.u32 %s163, 1
        %s512 = smul.addr %s511, 512
        %s513 = scalar_lea.vmem [#allocation11], %s512
        // Predicated region
        $region73: #{tpu_custom_call.1} parent=55 // pred_check
          %p514 = pneg %p176
        $region74: #{tpu_custom_call.1} parent=55 // pred_check_branch
          %516 = sbr.rel (%p514) target = $region76
        $region75: #{tpu_custom_call.1} parent=55 // pred_region
          %518 = dma.done %s510, 8192
        $region76: #{tpu_custom_call.1} parent=55 // pred_fallthru
          _
        %s519 = sand.u32 %s33, 1
        %s520 = scalar_lea.sflag [#allocation13], %s519
        %s521 = sand.u32 %s189, 1
        %s522 = smul.addr %s521, 512
        %s523 = scalar_lea.vmem [#allocation12], %s522
        // Predicated region
        $region77: #{tpu_custom_call.1} parent=55 // pred_check
          %p524 = pneg %p202
        $region78: #{tpu_custom_call.1} parent=55 // pred_check_branch
          %526 = sbr.rel (%p524) target = $region80
        $region79: #{tpu_custom_call.1} parent=55 // pred_region
          %528 = dma.done %s520, 8192
        $region80: #{tpu_custom_call.1} parent=55 // pred_fallthru
          _
        // Predicated region
        $region81: #{tpu_custom_call.1} parent=55 // pred_check
          %p529 = pneg %p244
        $region82: #{tpu_custom_call.1} parent=55 // pred_check_branch
          %531 = sbr.rel (%p529) target = $region84
        $region83: #{tpu_custom_call.1} parent=55 // pred_region
          %533 = dma.done [#allocation13], 6144
        $region84: #{tpu_custom_call.1} parent=55 // pred_fallthru
          _
        %s534 = sand.u32 %s55, 1
        %s535 = scalar_lea.sflag [#allocation4], %s534
        %s536 = sand.u32 %s55, 1
        %s537 = smul.addr %s536, 32
        %s538 = scalar_lea.vmem [#allocation3], %s537
        %p539 = pneg %p68
        %p540 = pneg %p65
        %s541 = sand.u32 %s33, 1
        %s542 = scalar_lea.sflag [#allocation7], %s541
        %s543 = sand.u32 %s83, 1
        %s544 = smul.addr %s543, 32
        %s545 = scalar_lea.vmem [#allocation6], %s544
        %p546 = pneg %p96
        %p547 = pneg %p93
        %s548 = sand.u32 %s33, 1
        %s549 = scalar_lea.sflag [#allocation7], %s548
        %s550 = sand.u32 %s111, 1
        %s551 = smul.addr %s550, 32
        %s552 = scalar_lea.vmem [#allocation8], %s551
        %p553 = pneg %p124
        %p554 = pneg %p121
        %s555 = sand.u32 %s33, 1
        %s556 = scalar_lea.sflag [#allocation10], %s555
        %s557 = sand.u32 %s137, 1
        %s558 = smul.addr %s557, 512
        %s559 = scalar_lea.vmem [#allocation9], %s558
        %p560 = pneg %p150
        %p561 = pneg %p147
        %s562 = sand.u32 %s33, 1
        %s563 = scalar_lea.sflag [#allocation10], %s562
        %s564 = sand.u32 %s163, 1
        %s565 = smul.addr %s564, 512
        %s566 = scalar_lea.vmem [#allocation11], %s565
        %p567 = pneg %p176
        %p568 = pneg %p173
        %s569 = sand.u32 %s33, 1
        %s570 = scalar_lea.sflag [#allocation13], %s569
        %s571 = sand.u32 %s189, 1
        %s572 = smul.addr %s571, 512
        %s573 = scalar_lea.vmem [#allocation12], %s572
        %p574 = pneg %p202
        %p575 = pneg %p199
        %p576 = pneg %p223
        %p577 = pneg %p220
        %p578 = pneg %p244
        %p579 = pneg %p241
        %p580 = pneg %p265
        %p581 = pneg %p262
        %p582 = pneg %p291
        %p583 = pneg %p288
        %s584 = smul.u32 4, %s38
        %s585 = smul.u32 4, %s38
        %s586 = smul.u32 4, %s38
        %s587 = smul.u32 64, %s38
        %s588 = smul.u32 64, %s38
        %s589 = smul.u32 64, %s38
        %p590 = scmp.eq.s32.totalorder %s38, 0
        // Predicated region
        $region85: #{tpu_custom_call.1} parent=55 // pred_check
          %p591 = pneg %p590
        $region86: #{tpu_custom_call.1} parent=55 // pred_check_branch
          %593 = sbr.rel (%p591) target = $region88
        $region87: #{tpu_custom_call.1} parent=55 // pred_region
          %594 = vst [vmem:[#allocation2] sm:$0xff] 0.0
          %595 = vst [vmem:[#allocation2 + $0x8] sm:$0xff] 0.0
          %596 = vst [vmem:[#allocation2 + $0x10] sm:$0xff] 0.0
        $region88: #{tpu_custom_call.1} parent=55 // pred_fallthru
          _
        %v597 = vld [vmem:[#allocation2] sm:$0xff]
        %v598 = vld [vmem:[%s473] sm:$0xff]
        %v599 = vld [vmem:[%s473 + $0x8] sm:$0xff]
        %v600 = vld [vmem:[%s473 + $0x10] sm:$0xff]
        %v601 = vld [vmem:[%s473 + $0x18] sm:$0xff]
        %v602 = vld [vmem:[%s503] sm:$0xff]
        %v603 = vld [vmem:[%s503 + $0x8] sm:$0xff]
        %v604 = vld [vmem:[%s503 + $0x10] sm:$0xff]
        %v605 = vld [vmem:[%s503 + $0x18] sm:$0xff]
        %v606 = vld [vmem:[%s503 + $0x20] sm:$0xff]
        %v607 = vld [vmem:[%s503 + $0x28] sm:$0xff]
        %v608 = vld [vmem:[%s503 + $0x30] sm:$0xff]
        %v609 = vld [vmem:[%s503 + $0x38] sm:$0xff]
        %v610 = vld [vmem:[%s503 + $0x40] sm:$0xff]
        %v611 = vld [vmem:[%s503 + $0x48] sm:$0xff]
        %v612 = vld [vmem:[%s503 + $0x50] sm:$0xff]
        %v613 = vld [vmem:[%s503 + $0x58] sm:$0xff]
        %v614 = vld [vmem:[%s503 + $0x60] sm:$0xff]
        %v615 = vld [vmem:[%s503 + $0x68] sm:$0xff]
        %v616 = vld [vmem:[%s503 + $0x70] sm:$0xff]
        %v617 = vld [vmem:[%s503 + $0x78] sm:$0xff]
        %v618 = vld [vmem:[%s503 + $0x80] sm:$0xff]
        %v619 = vld [vmem:[%s503 + $0x88] sm:$0xff]
        %v620 = vld [vmem:[%s503 + $0x90] sm:$0xff]
        %v621 = vld [vmem:[%s503 + $0x98] sm:$0xff]
        %v622 = vld [vmem:[%s503 + $0xa0] sm:$0xff]
        %v623 = vld [vmem:[%s503 + $0xa8] sm:$0xff]
        %v624 = vld [vmem:[%s503 + $0xb0] sm:$0xff]
        %v625 = vld [vmem:[%s503 + $0xb8] sm:$0xff]
        %v626 = vld [vmem:[%s503 + $0xc0] sm:$0xff]
        %v627 = vld [vmem:[%s503 + $0xc8] sm:$0xff]
        %v628 = vld [vmem:[%s503 + $0xd0] sm:$0xff]
        %v629 = vld [vmem:[%s503 + $0xd8] sm:$0xff]
        %v630 = vld [vmem:[%s503 + $0xe0] sm:$0xff]
        %v631 = vld [vmem:[%s503 + $0xe8] sm:$0xff]
        %v632 = vld [vmem:[%s503 + $0xf0] sm:$0xff]
        %v633 = vld [vmem:[%s503 + $0xf8] sm:$0xff]
        %v634 = vld [vmem:[%s503 + $0x100] sm:$0xff]
        %v635 = vld [vmem:[%s503 + $0x108] sm:$0xff]
        %v636 = vld [vmem:[%s503 + $0x110] sm:$0xff]
        %v637 = vld [vmem:[%s503 + $0x118] sm:$0xff]
        %v638 = vld [vmem:[%s503 + $0x120] sm:$0xff]
        %v639 = vld [vmem:[%s503 + $0x128] sm:$0xff]
        %v640 = vld [vmem:[%s503 + $0x130] sm:$0xff]
        %v641 = vld [vmem:[%s503 + $0x138] sm:$0xff]
        %v642 = vld [vmem:[%s503 + $0x140] sm:$0xff]
        %v643 = vld [vmem:[%s503 + $0x148] sm:$0xff]
        %v644 = vld [vmem:[%s503 + $0x150] sm:$0xff]
        %v645 = vld [vmem:[%s503 + $0x158] sm:$0xff]
        %v646 = vld [vmem:[%s503 + $0x160] sm:$0xff]
        %v647 = vld [vmem:[%s503 + $0x168] sm:$0xff]
        %v648 = vld [vmem:[%s503 + $0x170] sm:$0xff]
        %v649 = vld [vmem:[%s503 + $0x178] sm:$0xff]
        %v650 = vld [vmem:[%s503 + $0x180] sm:$0xff]
        %v651 = vld [vmem:[%s503 + $0x188] sm:$0xff]
        %v652 = vld [vmem:[%s503 + $0x190] sm:$0xff]
        %v653 = vld [vmem:[%s503 + $0x198] sm:$0xff]
        %v654 = vld [vmem:[%s503 + $0x1a0] sm:$0xff]
        %v655 = vld [vmem:[%s503 + $0x1a8] sm:$0xff]
        %v656 = vld [vmem:[%s503 + $0x1b0] sm:$0xff]
        %v657 = vld [vmem:[%s503 + $0x1b8] sm:$0xff]
        %v658 = vld [vmem:[%s503 + $0x1c0] sm:$0xff]
        %v659 = vld [vmem:[%s503 + $0x1c8] sm:$0xff]
        %v660 = vld [vmem:[%s503 + $0x1d0] sm:$0xff]
        %v661 = vld [vmem:[%s503 + $0x1d8] sm:$0xff]
        %v662 = vld [vmem:[%s503 + $0x1e0] sm:$0xff]
        %v663 = vld [vmem:[%s503 + $0x1e8] sm:$0xff]
        %v664 = vld [vmem:[%s503 + $0x1f0] sm:$0xff]
        %v665 = vld [vmem:[%s503 + $0x1f8] sm:$0xff]
        %666 = vmatpush.msra.mxu0 %v617
        %667 = vmatpush.msra.mxu0 %v616
        %668 = vmatpush.msra.mxu0 %v615
        %669 = vmatpush.msra.mxu0 %v614
        %670 = vmatpush.msra.mxu0 %v613
        %671 = vmatpush.msra.mxu0 %v612
        %672 = vmatpush.msra.mxu0 %v611
        %673 = vmatpush.msra.mxu0 %v610
        %674 = vmatpush.msra.mxu0 %v609
        %675 = vmatpush.msra.mxu0 %v608
        %676 = vmatpush.msra.mxu0 %v607
        %677 = vmatpush.msra.mxu0 %v606
        %678 = vmatpush.msra.mxu0 %v605
        %679 = vmatpush.msra.mxu0 %v604
        %680 = vmatpush.msra.mxu0 %v603
        %681 = vmatpush.msra.mxu0 %v602
        %682 = vmatmul.f32.gmra.mxu0 %v598
        %v683 = vpop.f32.mrf.mxu0
        %v684 = vadd.f32 0.0, %v683
        %685 = vdwg.mxu0
        %686 = vmatpush.msra.mxu0 %v633
        %687 = vmatpush.msra.mxu0 %v632
        %688 = vmatpush.msra.mxu0 %v631
        %689 = vmatpush.msra.mxu0 %v630
        %690 = vmatpush.msra.mxu0 %v629
        %691 = vmatpush.msra.mxu0 %v628
        %692 = vmatpush.msra.mxu0 %v627
        %693 = vmatpush.msra.mxu0 %v626
        %694 = vmatpush.msra.mxu0 %v625
        %695 = vmatpush.msra.mxu0 %v624
        %696 = vmatpush.msra.mxu0 %v623
        %697 = vmatpush.msra.mxu0 %v622
        %698 = vmatpush.msra.mxu0 %v621
        %699 = vmatpush.msra.mxu0 %v620
        %700 = vmatpush.msra.mxu0 %v619
        %701 = vmatpush.msra.mxu0 %v618
        %702 = vmatmul.f32.gmra.mxu0 %v599
        %v703 = vpop.f32.mrf.mxu0
        %v704 = vadd.f32 %v684, %v703
        %705 = vdwg.mxu0
        %706 = vmatpush.msra.mxu0 %v649
        %707 = vmatpush.msra.mxu0 %v648
        %708 = vmatpush.msra.mxu0 %v647
        %709 = vmatpush.msra.mxu0 %v646
        %710 = vmatpush.msra.mxu0 %v645
        %711 = vmatpush.msra.mxu0 %v644
        %712 = vmatpush.msra.mxu0 %v643
        %713 = vmatpush.msra.mxu0 %v642
        %714 = vmatpush.msra.mxu0 %v641
        %715 = vmatpush.msra.mxu0 %v640
        %716 = vmatpush.msra.mxu0 %v639
        %717 = vmatpush.msra.mxu0 %v638
        %718 = vmatpush.msra.mxu0 %v637
        %719 = vmatpush.msra.mxu0 %v636
        %720 = vmatpush.msra.mxu0 %v635
        %721 = vmatpush.msra.mxu0 %v634
        %722 = vmatmul.f32.gmra.mxu0 %v600
        %v723 = vpop.f32.mrf.mxu0
        %v724 = vadd.f32 %v704, %v723
        %725 = vdwg.mxu0
        %726 = vmatpush.msra.mxu0 %v665
        %727 = vmatpush.msra.mxu0 %v664
        %728 = vmatpush.msra.mxu0 %v663
        %729 = vmatpush.msra.mxu0 %v662
        %730 = vmatpush.msra.mxu0 %v661
        %731 = vmatpush.msra.mxu0 %v660
        %732 = vmatpush.msra.mxu0 %v659
        %733 = vmatpush.msra.mxu0 %v658
        %734 = vmatpush.msra.mxu0 %v657
        %735 = vmatpush.msra.mxu0 %v656
        %736 = vmatpush.msra.mxu0 %v655
        %737 = vmatpush.msra.mxu0 %v654
        %738 = vmatpush.msra.mxu0 %v653
        %739 = vmatpush.msra.mxu0 %v652
        %740 = vmatpush.msra.mxu0 %v651
        %741 = vmatpush.msra.mxu0 %v650
        %742 = vmatmul.f32.gmra.mxu0 %v601
        %v743 = vpop.f32.mrf.mxu0
        %v744 = vadd.f32 %v724, %v743
        %745 = vdwg.mxu0
        %v746 = vadd.f32 %v597, %v744
        %747 = vst [vmem:[#allocation2] sm:$0xff] %v746
        %v748 = vld [vmem:[#allocation2 + $0x8] sm:$0xff]
        %v749 = vld [vmem:[%s483] sm:$0xff]
        %v750 = vld [vmem:[%s483 + $0x8] sm:$0xff]
        %v751 = vld [vmem:[%s483 + $0x10] sm:$0xff]
        %v752 = vld [vmem:[%s483 + $0x18] sm:$0xff]
        %v753 = vld [vmem:[%s513] sm:$0xff]
        %v754 = vld [vmem:[%s513 + $0x8] sm:$0xff]
        %v755 = vld [vmem:[%s513 + $0x10] sm:$0xff]
        %v756 = vld [vmem:[%s513 + $0x18] sm:$0xff]
        %v757 = vld [vmem:[%s513 + $0x20] sm:$0xff]
        %v758 = vld [vmem:[%s513 + $0x28] sm:$0xff]
        %v759 = vld [vmem:[%s513 + $0x30] sm:$0xff]
        %v760 = vld [vmem:[%s513 + $0x38] sm:$0xff]
        %v761 = vld [vmem:[%s513 + $0x40] sm:$0xff]
        %v762 = vld [vmem:[%s513 + $0x48] sm:$0xff]
        %v763 = vld [vmem:[%s513 + $0x50] sm:$0xff]
        %v764 = vld [vmem:[%s513 + $0x58] sm:$0xff]
        %v765 = vld [vmem:[%s513 + $0x60] sm:$0xff]
        %v766 = vld [vmem:[%s513 + $0x68] sm:$0xff]
        %v767 = vld [vmem:[%s513 + $0x70] sm:$0xff]
        %v768 = vld [vmem:[%s513 + $0x78] sm:$0xff]
        %v769 = vld [vmem:[%s513 + $0x80] sm:$0xff]
        %v770 = vld [vmem:[%s513 + $0x88] sm:$0xff]
        %v771 = vld [vmem:[%s513 + $0x90] sm:$0xff]
        %v772 = vld [vmem:[%s513 + $0x98] sm:$0xff]
        %v773 = vld [vmem:[%s513 + $0xa0] sm:$0xff]
        %v774 = vld [vmem:[%s513 + $0xa8] sm:$0xff]
        %v775 = vld [vmem:[%s513 + $0xb0] sm:$0xff]
        %v776 = vld [vmem:[%s513 + $0xb8] sm:$0xff]
        %v777 = vld [vmem:[%s513 + $0xc0] sm:$0xff]
        %v778 = vld [vmem:[%s513 + $0xc8] sm:$0xff]
        %v779 = vld [vmem:[%s513 + $0xd0] sm:$0xff]
        %v780 = vld [vmem:[%s513 + $0xd8] sm:$0xff]
        %v781 = vld [vmem:[%s513 + $0xe0] sm:$0xff]
        %v782 = vld [vmem:[%s513 + $0xe8] sm:$0xff]
        %v783 = vld [vmem:[%s513 + $0xf0] sm:$0xff]
        %v784 = vld [vmem:[%s513 + $0xf8] sm:$0xff]
        %v785 = vld [vmem:[%s513 + $0x100] sm:$0xff]
        %v786 = vld [vmem:[%s513 + $0x108] sm:$0xff]
        %v787 = vld [vmem:[%s513 + $0x110] sm:$0xff]
        %v788 = vld [vmem:[%s513 + $0x118] sm:$0xff]
        %v789 = vld [vmem:[%s513 + $0x120] sm:$0xff]
        %v790 = vld [vmem:[%s513 + $0x128] sm:$0xff]
        %v791 = vld [vmem:[%s513 + $0x130] sm:$0xff]
        %v792 = vld [vmem:[%s513 + $0x138] sm:$0xff]
        %v793 = vld [vmem:[%s513 + $0x140] sm:$0xff]
        %v794 = vld [vmem:[%s513 + $0x148] sm:$0xff]
        %v795 = vld [vmem:[%s513 + $0x150] sm:$0xff]
        %v796 = vld [vmem:[%s513 + $0x158] sm:$0xff]
        %v797 = vld [vmem:[%s513 + $0x160] sm:$0xff]
        %v798 = vld [vmem:[%s513 + $0x168] sm:$0xff]
        %v799 = vld [vmem:[%s513 + $0x170] sm:$0xff]
        %v800 = vld [vmem:[%s513 + $0x178] sm:$0xff]
        %v801 = vld [vmem:[%s513 + $0x180] sm:$0xff]
        %v802 = vld [vmem:[%s513 + $0x188] sm:$0xff]
        %v803 = vld [vmem:[%s513 + $0x190] sm:$0xff]
        %v804 = vld [vmem:[%s513 + $0x198] sm:$0xff]
        %v805 = vld [vmem:[%s513 + $0x1a0] sm:$0xff]
        %v806 = vld [vmem:[%s513 + $0x1a8] sm:$0xff]
        %v807 = vld [vmem:[%s513 + $0x1b0] sm:$0xff]
        %v808 = vld [vmem:[%s513 + $0x1b8] sm:$0xff]
        %v809 = vld [vmem:[%s513 + $0x1c0] sm:$0xff]
        %v810 = vld [vmem:[%s513 + $0x1c8] sm:$0xff]
        %v811 = vld [vmem:[%s513 + $0x1d0] sm:$0xff]
        %v812 = vld [vmem:[%s513 + $0x1d8] sm:$0xff]
        %v813 = vld [vmem:[%s513 + $0x1e0] sm:$0xff]
        %v814 = vld [vmem:[%s513 + $0x1e8] sm:$0xff]
        %v815 = vld [vmem:[%s513 + $0x1f0] sm:$0xff]
        %v816 = vld [vmem:[%s513 + $0x1f8] sm:$0xff]
        %817 = vmatpush.msra.mxu0 %v768
        %818 = vmatpush.msra.mxu0 %v767
        %819 = vmatpush.msra.mxu0 %v766
        %820 = vmatpush.msra.mxu0 %v765
        %821 = vmatpush.msra.mxu0 %v764
        %822 = vmatpush.msra.mxu0 %v763
        %823 = vmatpush.msra.mxu0 %v762
        %824 = vmatpush.msra.mxu0 %v761
        %825 = vmatpush.msra.mxu0 %v760
        %826 = vmatpush.msra.mxu0 %v759
        %827 = vmatpush.msra.mxu0 %v758
        %828 = vmatpush.msra.mxu0 %v757
        %829 = vmatpush.msra.mxu0 %v756
        %830 = vmatpush.msra.mxu0 %v755
        %831 = vmatpush.msra.mxu0 %v754
        %832 = vmatpush.msra.mxu0 %v753
        %833 = vmatmul.f32.gmra.mxu0 %v749
        %v834 = vpop.f32.mrf.mxu0
        %v835 = vadd.f32 0.0, %v834
        %836 = vdwg.mxu0
        %837 = vmatpush.msra.mxu0 %v784
        %838 = vmatpush.msra.mxu0 %v783
        %839 = vmatpush.msra.mxu0 %v782
        %840 = vmatpush.msra.mxu0 %v781
        %841 = vmatpush.msra.mxu0 %v780
        %842 = vmatpush.msra.mxu0 %v779
        %843 = vmatpush.msra.mxu0 %v778
        %844 = vmatpush.msra.mxu0 %v777
        %845 = vmatpush.msra.mxu0 %v776
        %846 = vmatpush.msra.mxu0 %v775
        %847 = vmatpush.msra.mxu0 %v774
        %848 = vmatpush.msra.mxu0 %v773
        %849 = vmatpush.msra.mxu0 %v772
        %850 = vmatpush.msra.mxu0 %v771
        %851 = vmatpush.msra.mxu0 %v770
        %852 = vmatpush.msra.mxu0 %v769
        %853 = vmatmul.f32.gmra.mxu0 %v750
        %v854 = vpop.f32.mrf.mxu0
        %v855 = vadd.f32 %v835, %v854
        %856 = vdwg.mxu0
        %857 = vmatpush.msra.mxu0 %v800
        %858 = vmatpush.msra.mxu0 %v799
        %859 = vmatpush.msra.mxu0 %v798
        %860 = vmatpush.msra.mxu0 %v797
        %861 = vmatpush.msra.mxu0 %v796
        %862 = vmatpush.msra.mxu0 %v795
        %863 = vmatpush.msra.mxu0 %v794
        %864 = vmatpush.msra.mxu0 %v793
        %865 = vmatpush.msra.mxu0 %v792
        %866 = vmatpush.msra.mxu0 %v791
        %867 = vmatpush.msra.mxu0 %v790
        %868 = vmatpush.msra.mxu0 %v789
        %869 = vmatpush.msra.mxu0 %v788
        %870 = vmatpush.msra.mxu0 %v787
        %871 = vmatpush.msra.mxu0 %v786
        %872 = vmatpush.msra.mxu0 %v785
        %873 = vmatmul.f32.gmra.mxu0 %v751
        %v874 = vpop.f32.mrf.mxu0
        %v875 = vadd.f32 %v855, %v874
        %876 = vdwg.mxu0
        %877 = vmatpush.msra.mxu0 %v816
        %878 = vmatpush.msra.mxu0 %v815
        %879 = vmatpush.msra.mxu0 %v814
        %880 = vmatpush.msra.mxu0 %v813
        %881 = vmatpush.msra.mxu0 %v812
        %882 = vmatpush.msra.mxu0 %v811
        %883 = vmatpush.msra.mxu0 %v810
        %884 = vmatpush.msra.mxu0 %v809
        %885 = vmatpush.msra.mxu0 %v808
        %886 = vmatpush.msra.mxu0 %v807
        %887 = vmatpush.msra.mxu0 %v806
        %888 = vmatpush.msra.mxu0 %v805
        %889 = vmatpush.msra.mxu0 %v804
        %890 = vmatpush.msra.mxu0 %v803
        %891 = vmatpush.msra.mxu0 %v802
        %892 = vmatpush.msra.mxu0 %v801
        %893 = vmatmul.f32.gmra.mxu0 %v752
        %v894 = vpop.f32.mrf.mxu0
        %v895 = vadd.f32 %v875, %v894
        %896 = vdwg.mxu0
        %v897 = vadd.f32 %v748, %v895
        %898 = vst [vmem:[#allocation2 + $0x8] sm:$0xff] %v897
        %v899 = vld [vmem:[#allocation2 + $0x10] sm:$0xff]
        %v900 = vld [vmem:[%s493] sm:$0xff]
        %v901 = vld [vmem:[%s493 + $0x8] sm:$0xff]
        %v902 = vld [vmem:[%s493 + $0x10] sm:$0xff]
        %v903 = vld [vmem:[%s493 + $0x18] sm:$0xff]
        %v904 = vld [vmem:[%s523] sm:$0xff]
        %v905 = vld [vmem:[%s523 + $0x8] sm:$0xff]
        %v906 = vld [vmem:[%s523 + $0x10] sm:$0xff]
        %v907 = vld [vmem:[%s523 + $0x18] sm:$0xff]
        %v908 = vld [vmem:[%s523 + $0x20] sm:$0xff]
        %v909 = vld [vmem:[%s523 + $0x28] sm:$0xff]
        %v910 = vld [vmem:[%s523 + $0x30] sm:$0xff]
        %v911 = vld [vmem:[%s523 + $0x38] sm:$0xff]
        %v912 = vld [vmem:[%s523 + $0x40] sm:$0xff]
        %v913 = vld [vmem:[%s523 + $0x48] sm:$0xff]
        %v914 = vld [vmem:[%s523 + $0x50] sm:$0xff]
        %v915 = vld [vmem:[%s523 + $0x58] sm:$0xff]
        %v916 = vld [vmem:[%s523 + $0x60] sm:$0xff]
        %v917 = vld [vmem:[%s523 + $0x68] sm:$0xff]
        %v918 = vld [vmem:[%s523 + $0x70] sm:$0xff]
        %v919 = vld [vmem:[%s523 + $0x78] sm:$0xff]
        %v920 = vld [vmem:[%s523 + $0x80] sm:$0xff]
        %v921 = vld [vmem:[%s523 + $0x88] sm:$0xff]
        %v922 = vld [vmem:[%s523 + $0x90] sm:$0xff]
        %v923 = vld [vmem:[%s523 + $0x98] sm:$0xff]
        %v924 = vld [vmem:[%s523 + $0xa0] sm:$0xff]
        %v925 = vld [vmem:[%s523 + $0xa8] sm:$0xff]
        %v926 = vld [vmem:[%s523 + $0xb0] sm:$0xff]
        %v927 = vld [vmem:[%s523 + $0xb8] sm:$0xff]
        %v928 = vld [vmem:[%s523 + $0xc0] sm:$0xff]
        %v929 = vld [vmem:[%s523 + $0xc8] sm:$0xff]
        %v930 = vld [vmem:[%s523 + $0xd0] sm:$0xff]
        %v931 = vld [vmem:[%s523 + $0xd8] sm:$0xff]
        %v932 = vld [vmem:[%s523 + $0xe0] sm:$0xff]
        %v933 = vld [vmem:[%s523 + $0xe8] sm:$0xff]
        %v934 = vld [vmem:[%s523 + $0xf0] sm:$0xff]
        %v935 = vld [vmem:[%s523 + $0xf8] sm:$0xff]
        %v936 = vld [vmem:[%s523 + $0x100] sm:$0xff]
        %v937 = vld [vmem:[%s523 + $0x108] sm:$0xff]
        %v938 = vld [vmem:[%s523 + $0x110] sm:$0xff]
        %v939 = vld [vmem:[%s523 + $0x118] sm:$0xff]
        %v940 = vld [vmem:[%s523 + $0x120] sm:$0xff]
        %v941 = vld [vmem:[%s523 + $0x128] sm:$0xff]
        %v942 = vld [vmem:[%s523 + $0x130] sm:$0xff]
        %v943 = vld [vmem:[%s523 + $0x138] sm:$0xff]
        %v944 = vld [vmem:[%s523 + $0x140] sm:$0xff]
        %v945 = vld [vmem:[%s523 + $0x148] sm:$0xff]
        %v946 = vld [vmem:[%s523 + $0x150] sm:$0xff]
        %v947 = vld [vmem:[%s523 + $0x158] sm:$0xff]
        %v948 = vld [vmem:[%s523 + $0x160] sm:$0xff]
        %v949 = vld [vmem:[%s523 + $0x168] sm:$0xff]
        %v950 = vld [vmem:[%s523 + $0x170] sm:$0xff]
        %v951 = vld [vmem:[%s523 + $0x178] sm:$0xff]
        %v952 = vld [vmem:[%s523 + $0x180] sm:$0xff]
        %v953 = vld [vmem:[%s523 + $0x188] sm:$0xff]
        %v954 = vld [vmem:[%s523 + $0x190] sm:$0xff]
        %v955 = vld [vmem:[%s523 + $0x198] sm:$0xff]
        %v956 = vld [vmem:[%s523 + $0x1a0] sm:$0xff]
        %v957 = vld [vmem:[%s523 + $0x1a8] sm:$0xff]
        %v958 = vld [vmem:[%s523 + $0x1b0] sm:$0xff]
        %v959 = vld [vmem:[%s523 + $0x1b8] sm:$0xff]
        %v960 = vld [vmem:[%s523 + $0x1c0] sm:$0xff]
        %v961 = vld [vmem:[%s523 + $0x1c8] sm:$0xff]
        %v962 = vld [vmem:[%s523 + $0x1d0] sm:$0xff]
        %v963 = vld [vmem:[%s523 + $0x1d8] sm:$0xff]
        %v964 = vld [vmem:[%s523 + $0x1e0] sm:$0xff]
        %v965 = vld [vmem:[%s523 + $0x1e8] sm:$0xff]
        %v966 = vld [vmem:[%s523 + $0x1f0] sm:$0xff]
        %v967 = vld [vmem:[%s523 + $0x1f8] sm:$0xff]
        %968 = vmatpush.msra.mxu0 %v919
        %969 = vmatpush.msra.mxu0 %v918
        %970 = vmatpush.msra.mxu0 %v917
        %971 = vmatpush.msra.mxu0 %v916
        %972 = vmatpush.msra.mxu0 %v915
        %973 = vmatpush.msra.mxu0 %v914
        %974 = vmatpush.msra.mxu0 %v913
        %975 = vmatpush.msra.mxu0 %v912
        %976 = vmatpush.msra.mxu0 %v911
        %977 = vmatpush.msra.mxu0 %v910
        %978 = vmatpush.msra.mxu0 %v909
        %979 = vmatpush.msra.mxu0 %v908
        %980 = vmatpush.msra.mxu0 %v907
        %981 = vmatpush.msra.mxu0 %v906
        %982 = vmatpush.msra.mxu0 %v905
        %983 = vmatpush.msra.mxu0 %v904
        %984 = vmatmul.f32.gmra.mxu0 %v900
        %v985 = vpop.f32.mrf.mxu0
        %v986 = vadd.f32 0.0, %v985
        %987 = vdwg.mxu0
        %988 = vmatpush.msra.mxu0 %v935
        %989 = vmatpush.msra.mxu0 %v934
        %990 = vmatpush.msra.mxu0 %v933
        %991 = vmatpush.msra.mxu0 %v932
        %992 = vmatpush.msra.mxu0 %v931
        %993 = vmatpush.msra.mxu0 %v930
        %994 = vmatpush.msra.mxu0 %v929
        %995 = vmatpush.msra.mxu0 %v928
        %996 = vmatpush.msra.mxu0 %v927
        %997 = vmatpush.msra.mxu0 %v926
        %998 = vmatpush.msra.mxu0 %v925
        %999 = vmatpush.msra.mxu0 %v924
        %1000 = vmatpush.msra.mxu0 %v923
        %1001 = vmatpush.msra.mxu0 %v922
        %1002 = vmatpush.msra.mxu0 %v921
        %1003 = vmatpush.msra.mxu0 %v920
        %1004 = vmatmul.f32.gmra.mxu0 %v901
        %v1005 = vpop.f32.mrf.mxu0
        %v1006 = vadd.f32 %v986, %v1005
        %1007 = vdwg.mxu0
        %1008 = vmatpush.msra.mxu0 %v951
        %1009 = vmatpush.msra.mxu0 %v950
        %1010 = vmatpush.msra.mxu0 %v949
        %1011 = vmatpush.msra.mxu0 %v948
        %1012 = vmatpush.msra.mxu0 %v947
        %1013 = vmatpush.msra.mxu0 %v946
        %1014 = vmatpush.msra.mxu0 %v945
        %1015 = vmatpush.msra.mxu0 %v944
        %1016 = vmatpush.msra.mxu0 %v943
        %1017 = vmatpush.msra.mxu0 %v942
        %1018 = vmatpush.msra.mxu0 %v941
        %1019 = vmatpush.msra.mxu0 %v940
        %1020 = vmatpush.msra.mxu0 %v939
        %1021 = vmatpush.msra.mxu0 %v938
        %1022 = vmatpush.msra.mxu0 %v937
        %1023 = vmatpush.msra.mxu0 %v936
        %1024 = vmatmul.f32.gmra.mxu0 %v902
        %v1025 = vpop.f32.mrf.mxu0
        %v1026 = vadd.f32 %v1006, %v1025
        %1027 = vdwg.mxu0
        %1028 = vmatpush.msra.mxu0 %v967
        %1029 = vmatpush.msra.mxu0 %v966
        %1030 = vmatpush.msra.mxu0 %v965
        %1031 = vmatpush.msra.mxu0 %v964
        %1032 = vmatpush.msra.mxu0 %v963
        %1033 = vmatpush.msra.mxu0 %v962
        %1034 = vmatpush.msra.mxu0 %v961
        %1035 = vmatpush.msra.mxu0 %v960
        %1036 = vmatpush.msra.mxu0 %v959
        %1037 = vmatpush.msra.mxu0 %v958
        %1038 = vmatpush.msra.mxu0 %v957
        %1039 = vmatpush.msra.mxu0 %v956
        %1040 = vmatpush.msra.mxu0 %v955
        %1041 = vmatpush.msra.mxu0 %v954
        %1042 = vmatpush.msra.mxu0 %v953
        %1043 = vmatpush.msra.mxu0 %v952
        %1044 = vmatmul.f32.gmra.mxu0 %v903
        %v1045 = vpop.f32.mrf.mxu0
        %v1046 = vadd.f32 %v1026, %v1045
        %1047 = vdwg.mxu0
        %v1048 = vadd.f32 %v899, %v1046
        %1049 = vst [vmem:[#allocation2 + $0x10] sm:$0xff] %v1048
        %p1050 = scmp.eq.s32.totalorder %s38, 1
        // Predicated region
        $region89: #{tpu_custom_call.1} parent=55 // pred_check
          %p1051 = pneg %p1050
        $region90: #{tpu_custom_call.1} parent=55 // pred_check_branch
          %1053 = sbr.rel (%p1051) target = $region92
        $region91: #{tpu_custom_call.1} parent=55 // pred_region
          %v1054 = vld [vmem:[#allocation2] sm:$0xff]
          %v1055 = vld [vmem:[#allocation2 + $0x8] sm:$0xff]
          %v1056 = vld [vmem:[#allocation2 + $0x10] sm:$0xff]
          %v1057 = vld [vmem:[%s6] sm:$0x7]
          %v1059 = vperm.slane %v1057, 0
          %v1060 = vperm.slane %v1057, 1
          %v1061 = vperm.slane %v1057, 2
          %v1065 = vadd.f32 %v1054, %v1059
          %v1066 = vadd.f32 %v1055, %v1060
          %v1067 = vadd.f32 %v1056, %v1061
          %v1068 = vmax.f32 %v1065, 0.0
          %v1069 = vmax.f32 %v1066, 0.0
          %v1070 = vmax.f32 %v1067, 0.0
          %v1071 = vld [vmem:[#allocation14] sm:$0xff]
          %v1072 = vld [vmem:[#allocation14 + $0x8] sm:$0xff]
          %v1073 = vld [vmem:[#allocation14 + $0x10] sm:$0xff]
          %v1074 = vld [vmem:[#allocation14 + $0x18] sm:$0xff]
          %v1075 = vld [vmem:[#allocation14 + $0x20] sm:$0xff]
          %v1076 = vld [vmem:[#allocation14 + $0x28] sm:$0xff]
          %v1077 = vld [vmem:[#allocation14 + $0x30] sm:$0xff]
          %v1078 = vld [vmem:[#allocation14 + $0x38] sm:$0xff]
          %v1079 = vld [vmem:[#allocation14 + $0x40] sm:$0xff]
          %v1080 = vld [vmem:[#allocation14 + $0x48] sm:$0xff]
          %v1081 = vld [vmem:[#allocation14 + $0x50] sm:$0xff]
          %v1082 = vld [vmem:[#allocation14 + $0x58] sm:$0xff]
          %v1083 = vld [vmem:[#allocation14 + $0x60] sm:$0xff]
          %v1084 = vld [vmem:[#allocation14 + $0x68] sm:$0xff]
          %v1085 = vld [vmem:[#allocation14 + $0x70] sm:$0xff]
          %v1086 = vld [vmem:[#allocation14 + $0x78] sm:$0xff]
          %v1087 = vld [vmem:[#allocation14 + $0x80] sm:$0xff]
          %v1088 = vld [vmem:[#allocation14 + $0x88] sm:$0xff]
          %v1089 = vld [vmem:[#allocation14 + $0x90] sm:$0xff]
          %v1090 = vld [vmem:[#allocation14 + $0x98] sm:$0xff]
          %v1091 = vld [vmem:[#allocation14 + $0xa0] sm:$0xff]
          %v1092 = vld [vmem:[#allocation14 + $0xa8] sm:$0xff]
          %v1093 = vld [vmem:[#allocation14 + $0xb0] sm:$0xff]
          %v1094 = vld [vmem:[#allocation14 + $0xb8] sm:$0xff]
          %v1095 = vld [vmem:[#allocation14 + $0xc0] sm:$0xff]
          %v1096 = vld [vmem:[#allocation14 + $0xc8] sm:$0xff]
          %v1097 = vld [vmem:[#allocation14 + $0xd0] sm:$0xff]
          %v1098 = vld [vmem:[#allocation14 + $0xd8] sm:$0xff]
          %v1099 = vld [vmem:[#allocation14 + $0xe0] sm:$0xff]
          %v1100 = vld [vmem:[#allocation14 + $0xe8] sm:$0xff]
          %v1101 = vld [vmem:[#allocation14 + $0xf0] sm:$0xff]
          %v1102 = vld [vmem:[#allocation14 + $0xf8] sm:$0xff]
          %v1103 = vld [vmem:[#allocation14 + $0x100] sm:$0xff]
          %v1104 = vld [vmem:[#allocation14 + $0x108] sm:$0xff]
          %v1105 = vld [vmem:[#allocation14 + $0x110] sm:$0xff]
          %v1106 = vld [vmem:[#allocation14 + $0x118] sm:$0xff]
          %v1107 = vld [vmem:[#allocation14 + $0x120] sm:$0xff]
          %v1108 = vld [vmem:[#allocation14 + $0x128] sm:$0xff]
          %v1109 = vld [vmem:[#allocation14 + $0x130] sm:$0xff]
          %v1110 = vld [vmem:[#allocation14 + $0x138] sm:$0xff]
          %v1111 = vld [vmem:[#allocation14 + $0x140] sm:$0xff]
          %v1112 = vld [vmem:[#allocation14 + $0x148] sm:$0xff]
          %v1113 = vld [vmem:[#allocation14 + $0x150] sm:$0xff]
          %v1114 = vld [vmem:[#allocation14 + $0x158] sm:$0xff]
          %v1115 = vld [vmem:[#allocation14 + $0x160] sm:$0xff]
          %v1116 = vld [vmem:[#allocation14 + $0x168] sm:$0xff]
          %v1117 = vld [vmem:[#allocation14 + $0x170] sm:$0xff]
          %v1118 = vld [vmem:[#allocation14 + $0x178] sm:$0xff]
          %v1119 = vld [vmem:[%s8] sm:$0x1]
          %v1121 = vperm.slane %v1119, 0
          %1123 = vmatpush.msra.mxu0 %v1086
          %1124 = vmatpush.msra.mxu0 %v1085
          %1125 = vmatpush.msra.mxu0 %v1084
          %1126 = vmatpush.msra.mxu0 %v1083
          %1127 = vmatpush.msra.mxu0 %v1082
          %1128 = vmatpush.msra.mxu0 %v1081
          %1129 = vmatpush.msra.mxu0 %v1080
          %1130 = vmatpush.msra.mxu0 %v1079
          %1131 = vmatpush.msra.mxu0 %v1078
          %1132 = vmatpush.msra.mxu0 %v1077
          %1133 = vmatpush.msra.mxu0 %v1076
          %1134 = vmatpush.msra.mxu0 %v1075
          %1135 = vmatpush.msra.mxu0 %v1074
          %1136 = vmatpush.msra.mxu0 %v1073
          %1137 = vmatpush.msra.mxu0 %v1072
          %1138 = vmatpush.msra.mxu0 %v1071
          %1139 = vmatmul.f32.gmra.mxu0 %v1068
          %v1140 = vpop.f32.mrf.mxu0
          %v1141 = vadd.f32 %v1121, %v1140
          %1142 = vdwg.mxu0
          %1143 = vmatpush.msra.mxu0 %v1102
          %1144 = vmatpush.msra.mxu0 %v1101
          %1145 = vmatpush.msra.mxu0 %v1100
          %1146 = vmatpush.msra.mxu0 %v1099
          %1147 = vmatpush.msra.mxu0 %v1098
          %1148 = vmatpush.msra.mxu0 %v1097
          %1149 = vmatpush.msra.mxu0 %v1096
          %1150 = vmatpush.msra.mxu0 %v1095
          %1151 = vmatpush.msra.mxu0 %v1094
          %1152 = vmatpush.msra.mxu0 %v1093
          %1153 = vmatpush.msra.mxu0 %v1092
          %1154 = vmatpush.msra.mxu0 %v1091
          %1155 = vmatpush.msra.mxu0 %v1090
          %1156 = vmatpush.msra.mxu0 %v1089
          %1157 = vmatpush.msra.mxu0 %v1088
          %1158 = vmatpush.msra.mxu0 %v1087
          %1159 = vmatmul.f32.gmra.mxu0 %v1069
          %v1160 = vpop.f32.mrf.mxu0
          %v1161 = vadd.f32 %v1141, %v1160
          %1162 = vdwg.mxu0
          %1163 = vmatpush.msra.mxu0 %v1118
          %1164 = vmatpush.msra.mxu0 %v1117
          %1165 = vmatpush.msra.mxu0 %v1116
          %1166 = vmatpush.msra.mxu0 %v1115
          %1167 = vmatpush.msra.mxu0 %v1114
          %1168 = vmatpush.msra.mxu0 %v1113
          %1169 = vmatpush.msra.mxu0 %v1112
          %1170 = vmatpush.msra.mxu0 %v1111
          %1171 = vmatpush.msra.mxu0 %v1110
          %1172 = vmatpush.msra.mxu0 %v1109
          %1173 = vmatpush.msra.mxu0 %v1108
          %1174 = vmatpush.msra.mxu0 %v1107
          %1175 = vmatpush.msra.mxu0 %v1106
          %1176 = vmatpush.msra.mxu0 %v1105
          %1177 = vmatpush.msra.mxu0 %v1104
          %1178 = vmatpush.msra.mxu0 %v1103
          %1179 = vmatmul.f32.gmra.mxu0 %v1070
          %v1180 = vpop.f32.mrf.mxu0
          %v1181 = vadd.f32 %v1161, %v1180
          %1182 = vdwg.mxu0
          %1183 = vst [vmem:[#allocation15] sm:$0xff] %v1181
        $region92: #{tpu_custom_call.1} parent=55 // pred_fallthru
          _
        // Predicated region
        $region93: #{tpu_custom_call.1} parent=55 // pred_check
          %p1184 = pneg %p288
        $region94: #{tpu_custom_call.1} parent=55 // pred_check_branch
          %1186 = sbr.rel (%p1184) target = $region96
        $region95: #{tpu_custom_call.1} parent=55 // pred_region
          %1188 = vsyncadd [#allocation5], 0
          %s1189 = smul.addr %s37, 8
          %s1190 = scalar_lea.hbm %s9, %s1189
          %s1192 = sshll.u32 [#allocation15], 4
          %s1193 = int_to_ptr.vmem [resolvable:$true] %s1192
          %s1194 = sshll.u32 %s1190, 4
          %s1195 = int_to_ptr.hbm [resolvable:$true] %s1194
          %1197 = dma.vmem_to_hbm [thread:$0]  %s1193, 128, %s1195, [#allocation5]
        $region96: #{tpu_custom_call.1} parent=55 // pred_fallthru
          _
        // Predicated region
        $region97: #{tpu_custom_call.1} parent=55 // pred_check
          %p1198 = pneg %p288
        $region98: #{tpu_custom_call.1} parent=55 // pred_check_branch
          %1200 = sbr.rel (%p1198) target = $region100
        $region99: #{tpu_custom_call.1} parent=55 // pred_region
          %1202 = dma.done [#allocation5], 128
        $region100: #{tpu_custom_call.1} parent=55 // pred_fallthru
          _
      $region56: #{tpu_custom_call.1} parent=5 // pred_fallthru
        _
      %p1203 = scmp.le.s32.totalorder 2, %s28
      // Predicated region
      $region101: #{tpu_custom_call.1} parent=5 // pred_check
        %p1204 = pneg %p1203
      $region102: #{tpu_custom_call.1} parent=5 // pred_check_branch
        %1206 = sbr.rel (%p1204) target = $region104
      $region103: #{tpu_custom_call.1} parent=5 // pred_region
        %s1207 = ssub.s32 %s28, 2
      $region104: #{tpu_custom_call.1} parent=5 // pred_fallthru
        _
    $region6: #{tpu_custom_call.1} parent=1 // loop_footer
      %s32 = sadd.s32 1, %s28
    $region7: #{tpu_custom_call.1} parent=1 // loop_footer_branch
      %27 = sbr.rel target = $region3
    $region8: #{tpu_custom_call.1} parent=1 // loop_exit
      _
    %1208 = vsyncpa [#allocation4], 1
    %s1209 = scalar_lea.sflag [#allocation4], 1
    %1210 = vsyncpa %s1209, 1
    %1211 = vsyncpa [#allocation7], 1
    %s1212 = scalar_lea.sflag [#allocation7], 1
    %1213 = vsyncpa %s1212, 1
    %1214 = vsyncpa [#allocation10], 1
    %s1215 = scalar_lea.sflag [#allocation10], 1
    %1216 = vsyncpa %s1215, 1
    %1217 = vsyncpa [#allocation13], 1
    %s1218 = scalar_lea.sflag [#allocation13], 1
    %1219 = vsyncpa %s1218, 1
    %1220 = vsyncpa [#allocation5], 1
    %s1221 = scalar_lea.sflag [#allocation5], 1
    %1222 = vsyncpa %s1221, 1

</llo_original>
